<compile_context>
chip_gen: v5e
topology: v5e:2x2
jax: 0.10.0
libtpu: 0.0.40
codegen_flags: <defaults>
</compile_context>

<pallas_src>
import math

import jax
import jax.numpy as jnp
from jax.experimental import pallas as pl
from jax.experimental.pallas import tpu as pltpu


# ----------------------------- fused kernel -------------------------------- #

def _round_up(x, m):
    return ((x + m - 1) // m) * m


def _make_fused_kernel(n_layer, h_pad, n_class):
    """Builds the fused AKGNN forward kernel (layer count / pad sizes are compile-time)."""

    def kernel(coeffs_ref,          # SMEM [2*n_layer]: (c1, c2) per layer, interleaved
               x_ref,               # VMEM [N_pad, IN_pad]      bf16
               adj_ref,             # VMEM [N_pad, N_pad]       bf16 (0/1, exact)
               deg_ref,             # VMEM [N_pad, 1]           f32 rowsum(A)
               tw_ref, tb_ref,      # VMEM [IN_pad, H_pad] bf16, [1, H_pad] f32
               pw_ref, pb_ref,      # VMEM [n_layer*H_pad, C_pad] bf16, [1, C_pad] f32
               o_ref,               # VMEM [N_pad, C_pad]       f32 (accumulator + output)
               h_scr):              # VMEM scratch [N_pad, H_pad] f32
        bf16 = jnp.bfloat16

        # --- theta: h = relu(x @ W + b)  (dropout = identity in eval mode) ---
        h0 = jnp.dot(x_ref[...], tw_ref[...], preferred_element_type=jnp.float32)
        h_scr[...] = jnp.maximum(h0 + tb_ref[...], 0.0)

        # Accumulate logits directly in the output ref (bounded live range).
        o_ref[...] = jnp.zeros_like(o_ref)

        deg_a = deg_ref[...]                                      # [N_pad, 1] f32

        # Layer loop is unrolled at trace time (n_layer is small & static) -> static slices.
        # AKConv, algebraically simplified (never materializes a_hat / a_norm / eye):
        #   deg   = c1 * rowsum(A) + c2
        #   h_out = rsqrt(deg) * ( c1 * (A @ (rsqrt(deg)*h)) + c2 * (rsqrt(deg)*h) )
        for l in range(n_layer):
            c1 = coeffs_ref[2 * l]
            c2 = coeffs_ref[2 * l + 1]
            inv_sqrt_d = jax.lax.rsqrt(c1 * deg_a + c2)           # [N_pad, 1], deg > 0
            hs = h_scr[...] * inv_sqrt_d                          # f32 row-scale (VPU)
            ah = jnp.dot(adj_ref[...], hs.astype(bf16),           # bf16 MXU, f32 accum
                         preferred_element_type=jnp.float32)
            h_new = (c1 * ah + c2 * hs) * inv_sqrt_d              # f32 (VPU)
            h_scr[...] = h_new
            # Fold this layer's contribution to the predictor (replaces the concat buffer).
            o_ref[...] += jnp.dot(h_new.astype(bf16),
                                  pw_ref[l * h_pad:(l + 1) * h_pad, :],
                                  preferred_element_type=jnp.float32)

        # --- predictor bias + log_softmax over classes (mask padded class lanes) ---
        logits = o_ref[...] + pb_ref[...]
        lane = jax.lax.broadcasted_iota(jnp.int32, logits.shape, 1)
        logits = jnp.where(lane < n_class, logits, -1e30)
        m = jnp.max(logits, axis=1, keepdims=True)
        z = logits - m
        lse = jnp.log(jnp.sum(jnp.exp(z), axis=1, keepdims=True))
        o_ref[...] = z - lse

    return kernel


# ----------------------------- wrapper ------------------------------------- #

def _akgnn_forward_impl(x, adj, params):
    n, in_dim = x.shape
    h_dim = params["theta_w"].shape[1]
    n_class = params["pred_w"].shape[1]
    n_layer = len(params["lambdas"])

    n_pad = _round_up(max(n, 128), 128)      # lane-dense adj / clean MXU K dim
    in_pad = _round_up(in_dim, 128)
    h_pad = _round_up(h_dim, 128)
    c_pad = _round_up(n_class, 128)

    f32, bf16 = jnp.float32, jnp.bfloat16

    # Padded, MXU-ready operands (single jnp.pad each; fused under jit).
    x_p = jnp.pad(x.astype(bf16), ((0, n_pad - n), (0, in_pad - in_dim)))
    adj_p = jnp.pad(adj.astype(bf16), ((0, n_pad - n), (0, n_pad - n)))
    # Row degree of A computed once here in f32 (avoids an in-kernel f32 copy of bf16 adj).
    deg_p = jnp.pad(jnp.sum(adj.astype(f32), axis=1, keepdims=True),
                    ((0, n_pad - n), (0, 0)))
    tw_p = jnp.pad(params["theta_w"].astype(bf16),
                   ((0, in_pad - in_dim), (0, h_pad - h_dim)))
    tb_p = jnp.pad(params["theta_b"].astype(f32), ((0, h_pad - h_dim),)).reshape(1, h_pad)
    pw_p = jnp.pad(params["pred_w"].astype(bf16).reshape(n_layer, h_dim, n_class),
                   ((0, 0), (0, h_pad - h_dim), (0, c_pad - n_class))
                   ).reshape(n_layer * h_pad, c_pad)
    pb_p = jnp.pad(params["pred_b"].astype(f32), ((0, c_pad - n_class),)).reshape(1, c_pad)

    # Per-layer (c1, c2) with lam = 1 + relu(lambda): c1 = (2*lam-2)/lam, c2 = 2/lam.
    lams = 1.0 + jnp.maximum(jnp.stack(params["lambdas"]).astype(f32), 0.0)
    coeffs = jnp.stack([(2.0 * lams - 2.0) / lams, 2.0 / lams], axis=1).reshape(-1)

    kernel = _make_fused_kernel(n_layer, h_pad, n_class)

    vmem_spec = pl.BlockSpec(memory_space=pltpu.MemorySpace.VMEM)
    smem_spec = pl.BlockSpec(memory_space=pltpu.MemorySpace.SMEM)

    # Explicit VMEM budget: resident buffers + headroom (default scoped limit is too small
    # for adj at realistic N).
    resident_bytes = (
        n_pad * in_pad * 2 +            # x (bf16)
        n_pad * n_pad * 2 +             # adj (bf16)
        n_pad * 1 * 4 +                 # deg (f32)
        in_pad * h_pad * 2 + h_pad * 4 +        # theta w/b
        n_layer * h_pad * c_pad * 2 + c_pad * 4 +  # predictor w/b
        n_pad * c_pad * 4 +             # output / logits accumulator
        n_pad * h_pad * 4)              # h scratch
    vmem_limit = min(max(int(1.4 * resident_bytes) + (8 << 20), 32 << 20), 128 << 20)

    out_p = pl.pallas_call(
        kernel,
        out_shape=jax.ShapeDtypeStruct((n_pad, c_pad), f32),
        in_specs=[smem_spec, vmem_spec, vmem_spec, vmem_spec,
                  vmem_spec, vmem_spec, vmem_spec, vmem_spec],
        out_specs=vmem_spec,
        scratch_shapes=[pltpu.VMEM((n_pad, h_pad), f32)],
        compiler_params=pltpu.CompilerParams(vmem_limit_bytes=vmem_limit),
    )(coeffs, x_p, adj_p, deg_p, tw_p, tb_p, pw_p, pb_p)

    return out_p[:n, :n_class]


akgnn_forward = jax.jit(_akgnn_forward_impl)


# ----------------------------- pure-JAX reference -------------------------- #

def akgnn_reference(x, adj, params):
    h = jax.nn.relu(x @ params["theta_w"] + params["theta_b"])
    n = adj.shape[0]
    eye = jnp.eye(n, dtype=jnp.float32)
    h_list = []
    for lam_param in params["lambdas"]:
        lam = 1.0 + jax.nn.relu(lam_param)
        a_hat = ((2.0 * lam - 2.0) / lam) * adj + (2.0 / lam) * eye
        d_inv_sqrt = 1.0 / jnp.sqrt(jnp.sum(a_hat, axis=1))
        a_norm = d_inv_sqrt[:, None] * a_hat * d_inv_sqrt[None, :]
        h = a_norm @ h
        h_list.append(h)
    h_cat = jnp.concatenate(h_list, axis=1)
    logits = h_cat @ params["pred_w"] + params["pred_b"]
    return jax.nn.log_softmax(logits, axis=1)


# ----------------------------- params -------------------------------------- #

def init_params(key, n_layer, in_dim, h_dim, n_class):
    k1, k2, k3, k4 = jax.random.split(key, 4)
    stdv_t = 1.0 / math.sqrt(in_dim)
    stdv_p = 1.0 / math.sqrt(h_dim * n_layer)
    return {
        # stored as [in, out] (transpose of PyTorch's [out, in])
        "theta_w": jax.random.uniform(k1, (in_dim, h_dim), jnp.float32, -stdv_t, stdv_t),
        "theta_b": jax.random.uniform(k2, (h_dim,), jnp.float32, -stdv_t, stdv_t),
        "pred_w": jax.random.uniform(k3, (h_dim * n_layer, n_class), jnp.float32, -stdv_p, stdv_p),
        "pred_b": jax.random.uniform(k4, (n_class,), jnp.float32, -stdv_p, stdv_p),
        # AKConv lambda parameters initialized to 1.0 (per AKGNN reset_parameters)
        "lambdas": [jnp.float32(1.0) for _ in range(n_layer)],
    }


if __name__ == "__main__":
    N, IN_DIM, H_DIM, N_LAYER, N_CLASS = 16, 16, 32, 2, 8

    key = jax.random.PRNGKey(0)
    k_x, k_adj, k_p = jax.random.split(key, 3)

    x = jax.random.normal(k_x, (N, IN_DIM), jnp.float32)

    # symmetric binary adjacency (no self loops; AKConv adds the scaled identity)
    upper = (jax.random.uniform(k_adj, (N, N)) > 0.6).astype(jnp.float32)
    upper = jnp.triu(upper, k=1)
    adj = upper + upper.T

    params = init_params(k_p, N_LAYER, IN_DIM, H_DIM, N_CLASS)

    out = akgnn_forward(x, adj, params)
    out = jax.block_until_ready(out)
    ref = akgnn_reference(x, adj, params)

    assert out.shape == (N, N_CLASS)
    assert bool(jnp.all(jnp.isfinite(out)))
    # rows of log_softmax should exp-sum to 1 (exact structural property of the kernel)
    assert bool(jnp.allclose(jnp.sum(jnp.exp(out), axis=1), 1.0, atol=1e-4))
    # match the pure-f32 reference within bf16-MXU rounding (kernel feeds dots in bf16,
    # accumulates in f32)
    max_diff = float(jnp.max(jnp.abs(out - ref)))
    assert bool(jnp.allclose(out, ref, atol=2e-2, rtol=2e-2)), f"max|diff|={max_diff}"

    print("KERNEL_OK")
</pallas_src>

<mosaic_0001>
module attributes {stable_mosaic.version = 11 : i64} {
  func.func @kernel(%arg0: memref<4xf32, #tpu.memory_space<smem>>, %arg1: memref<128x128xbf16, #tpu.memory_space<vmem>>, %arg2: memref<128x128xbf16, #tpu.memory_space<vmem>>, %arg3: memref<128x1xf32, #tpu.memory_space<vmem>>, %arg4: memref<128x128xbf16, #tpu.memory_space<vmem>>, %arg5: memref<1x128xf32, #tpu.memory_space<vmem>>, %arg6: memref<256x128xbf16, #tpu.memory_space<vmem>>, %arg7: memref<1x128xf32, #tpu.memory_space<vmem>>, %arg8: memref<128x128xf32, #tpu.memory_space<vmem>>, %arg9: memref<128x128xf32, #tpu.memory_space<vmem>>) attributes {dimension_semantics = [], scalar_prefetch = 0 : i64, scratch_operands = 1 : i64, tpu.core_type = #tpu.core_type<tc>} {
    %c0 = arith.constant 0 : index
    %c0_0 = arith.constant 0 : index
    %0 = vector.load %arg1[%c0, %c0_0] : memref<128x128xbf16, #tpu.memory_space<vmem>>, vector<128x128xbf16>
    %c0_1 = arith.constant 0 : index
    %c0_2 = arith.constant 0 : index
    %1 = vector.load %arg4[%c0_1, %c0_2] : memref<128x128xbf16, #tpu.memory_space<vmem>>, vector<128x128xbf16>
    %cst = arith.constant dense<0.000000e+00> : vector<128x128xf32>
    %2 = tpu.matmul %0, %1, %cst {dimension_numbers = #tpu.dot_dimension_numbers<[1], [0], [0], [1], [0, 0, 1, 1], [], []>} : vector<128x128xbf16>, vector<128x128xbf16>, vector<128x128xf32> -> vector<128x128xf32>
    %c0_3 = arith.constant 0 : index
    %c0_4 = arith.constant 0 : index
    %3 = vector.load %arg5[%c0_3, %c0_4] : memref<1x128xf32, #tpu.memory_space<vmem>>, vector<1x128xf32>
    %4 = vector.broadcast %3 : vector<1x128xf32> to vector<128x128xf32>
    %5 = arith.addf %2, %4 : vector<128x128xf32>
    %cst_5 = arith.constant 0.000000e+00 : f32
    %6 = vector.broadcast %cst_5 : f32 to vector<128x128xf32>
    %7 = arith.maximumf %5, %6 : vector<128x128xf32>
    %c0_6 = arith.constant 0 : index
    %c0_7 = arith.constant 0 : index
    %8 = vector.load %arg9[%c0_6, %c0_7] : memref<128x128xf32, #tpu.memory_space<vmem>>, vector<128x128xf32>
    tpu.vector_store %arg9[%c0_6, %c0_7], %7 {strides = array<i32>} : memref<128x128xf32, #tpu.memory_space<vmem>>, vector<128x128xf32>,
    %cst_8 = arith.constant 0.000000e+00 : f32
    %9 = vector.broadcast %cst_8 : f32 to vector<128x128xf32>
    %c0_9 = arith.constant 0 : index
    %c0_10 = arith.constant 0 : index
    %10 = vector.load %arg8[%c0_9, %c0_10] : memref<128x128xf32, #tpu.memory_space<vmem>>, vector<128x128xf32>
    tpu.vector_store %arg8[%c0_9, %c0_10], %9 {strides = array<i32>} : memref<128x128xf32, #tpu.memory_space<vmem>>, vector<128x128xf32>,
    %c0_11 = arith.constant 0 : index
    %c0_12 = arith.constant 0 : index
    %11 = vector.load %arg3[%c0_11, %c0_12] : memref<128x1xf32, #tpu.memory_space<vmem>>, vector<128x1xf32>
    %c0_13 = arith.constant 0 : index
    %12 = memref.load %arg0[%c0_13] : memref<4xf32, #tpu.memory_space<smem>>
    %c1 = arith.constant 1 : index
    %13 = memref.load %arg0[%c1] : memref<4xf32, #tpu.memory_space<smem>>
    %14 = vector.broadcast %12 : f32 to vector<128x1xf32>
    %15 = arith.mulf %14, %11 : vector<128x1xf32>
    %16 = vector.broadcast %13 : f32 to vector<128x1xf32>
    %17 = arith.addf %15, %16 : vector<128x1xf32>
    %18 = math.rsqrt %17 : vector<128x1xf32>
    %c0_14 = arith.constant 0 : index
    %c0_15 = arith.constant 0 : index
    %19 = vector.load %arg9[%c0_14, %c0_15] : memref<128x128xf32, #tpu.memory_space<vmem>>, vector<128x128xf32>
    %20 = vector.broadcast %18 : vector<128x1xf32> to vector<128x128xf32>
    %21 = arith.mulf %19, %20 : vector<128x128xf32>
    %c0_16 = arith.constant 0 : index
    %c0_17 = arith.constant 0 : index
    %22 = vector.load %arg2[%c0_16, %c0_17] : memref<128x128xbf16, #tpu.memory_space<vmem>>, vector<128x128xbf16>
    %23 = arith.truncf %21 : vector<128x128xf32> to vector<128x128xbf16>
    %cst_18 = arith.constant dense<0.000000e+00> : vector<128x128xf32>
    %24 = tpu.matmul %22, %23, %cst_18 {dimension_numbers = #tpu.dot_dimension_numbers<[1], [0], [0], [1], [0, 0, 1, 1], [], []>} : vector<128x128xbf16>, vector<128x128xbf16>, vector<128x128xf32> -> vector<128x128xf32>
    %25 = vector.broadcast %12 : f32 to vector<128x128xf32>
    %26 = arith.mulf %25, %24 : vector<128x128xf32>
    %27 = vector.broadcast %13 : f32 to vector<128x128xf32>
    %28 = arith.mulf %27, %21 : vector<128x128xf32>
    %29 = arith.addf %26, %28 : vector<128x128xf32>
    %30 = vector.broadcast %18 : vector<128x1xf32> to vector<128x128xf32>
    %31 = arith.mulf %29, %30 : vector<128x128xf32>
    %c0_19 = arith.constant 0 : index
    %c0_20 = arith.constant 0 : index
    %32 = vector.load %arg9[%c0_19, %c0_20] : memref<128x128xf32, #tpu.memory_space<vmem>>, vector<128x128xf32>
    tpu.vector_store %arg9[%c0_19, %c0_20], %31 {strides = array<i32>} : memref<128x128xf32, #tpu.memory_space<vmem>>, vector<128x128xf32>,
    %c0_21 = arith.constant 0 : index
    %c0_22 = arith.constant 0 : index
    %33 = vector.load %arg8[%c0_21, %c0_22] : memref<128x128xf32, #tpu.memory_space<vmem>>, vector<128x128xf32>
    %34 = arith.truncf %31 : vector<128x128xf32> to vector<128x128xbf16>
    %c0_23 = arith.constant 0 : index
    %c0_24 = arith.constant 0 : index
    %35 = vector.load %arg6[%c0_23, %c0_24] : memref<256x128xbf16, #tpu.memory_space<vmem>>, vector<128x128xbf16>
    %cst_25 = arith.constant dense<0.000000e+00> : vector<128x128xf32>
    %36 = tpu.matmul %34, %35, %cst_25 {dimension_numbers = #tpu.dot_dimension_numbers<[1], [0], [0], [1], [0, 0, 1, 1], [], []>} : vector<128x128xbf16>, vector<128x128xbf16>, vector<128x128xf32> -> vector<128x128xf32>
    %37 = arith.addf %33, %36 : vector<128x128xf32>
    %c0_26 = arith.constant 0 : index
    %c0_27 = arith.constant 0 : index
    %38 = vector.load %arg8[%c0_26, %c0_27] : memref<128x128xf32, #tpu.memory_space<vmem>>, vector<128x128xf32>
    tpu.vector_store %arg8[%c0_26, %c0_27], %37 {strides = array<i32>} : memref<128x128xf32, #tpu.memory_space<vmem>>, vector<128x128xf32>,
    %c2 = arith.constant 2 : index
    %39 = memref.load %arg0[%c2] : memref<4xf32, #tpu.memory_space<smem>>
    %c3 = arith.constant 3 : index
    %40 = memref.load %arg0[%c3] : memref<4xf32, #tpu.memory_space<smem>>
    %41 = vector.broadcast %39 : f32 to vector<128x1xf32>
    %42 = arith.mulf %41, %11 : vector<128x1xf32>
    %43 = vector.broadcast %40 : f32 to vector<128x1xf32>
    %44 = arith.addf %42, %43 : vector<128x1xf32>
    %45 = math.rsqrt %44 : vector<128x1xf32>
    %c0_28 = arith.constant 0 : index
    %c0_29 = arith.constant 0 : index
    %46 = vector.load %arg9[%c0_28, %c0_29] : memref<128x128xf32, #tpu.memory_space<vmem>>, vector<128x128xf32>
    %47 = vector.broadcast %45 : vector<128x1xf32> to vector<128x128xf32>
    %48 = arith.mulf %46, %47 : vector<128x128xf32>
    %c0_30 = arith.constant 0 : index
    %c0_31 = arith.constant 0 : index
    %49 = vector.load %arg2[%c0_30, %c0_31] : memref<128x128xbf16, #tpu.memory_space<vmem>>, vector<128x128xbf16>
    %50 = arith.truncf %48 : vector<128x128xf32> to vector<128x128xbf16>
    %cst_32 = arith.constant dense<0.000000e+00> : vector<128x128xf32>
    %51 = tpu.matmul %49, %50, %cst_32 {dimension_numbers = #tpu.dot_dimension_numbers<[1], [0], [0], [1], [0, 0, 1, 1], [], []>} : vector<128x128xbf16>, vector<128x128xbf16>, vector<128x128xf32> -> vector<128x128xf32>
    %52 = vector.broadcast %39 : f32 to vector<128x128xf32>
    %53 = arith.mulf %52, %51 : vector<128x128xf32>
    %54 = vector.broadcast %40 : f32 to vector<128x128xf32>
    %55 = arith.mulf %54, %48 : vector<128x128xf32>
    %56 = arith.addf %53, %55 : vector<128x128xf32>
    %57 = vector.broadcast %45 : vector<128x1xf32> to vector<128x128xf32>
    %58 = arith.mulf %56, %57 : vector<128x128xf32>
    %c0_33 = arith.constant 0 : index
    %c0_34 = arith.constant 0 : index
    %59 = vector.load %arg9[%c0_33, %c0_34] : memref<128x128xf32, #tpu.memory_space<vmem>>, vector<128x128xf32>
    tpu.vector_store %arg9[%c0_33, %c0_34], %58 {strides = array<i32>} : memref<128x128xf32, #tpu.memory_space<vmem>>, vector<128x128xf32>,
    %c0_35 = arith.constant 0 : index
    %c0_36 = arith.constant 0 : index
    %60 = vector.load %arg8[%c0_35, %c0_36] : memref<128x128xf32, #tpu.memory_space<vmem>>, vector<128x128xf32>
    %61 = arith.truncf %58 : vector<128x128xf32> to vector<128x128xbf16>
    %c128 = arith.constant 128 : index
    %c0_37 = arith.constant 0 : index
    %62 = vector.load %arg6[%c128, %c0_37] : memref<256x128xbf16, #tpu.memory_space<vmem>>, vector<128x128xbf16>
    %cst_38 = arith.constant dense<0.000000e+00> : vector<128x128xf32>
    %63 = tpu.matmul %61, %62, %cst_38 {dimension_numbers = #tpu.dot_dimension_numbers<[1], [0], [0], [1], [0, 0, 1, 1], [], []>} : vector<128x128xbf16>, vector<128x128xbf16>, vector<128x128xf32> -> vector<128x128xf32>
    %64 = arith.addf %60, %63 : vector<128x128xf32>
    %c0_39 = arith.constant 0 : index
    %c0_40 = arith.constant 0 : index
    %65 = vector.load %arg8[%c0_39, %c0_40] : memref<128x128xf32, #tpu.memory_space<vmem>>, vector<128x128xf32>
    tpu.vector_store %arg8[%c0_39, %c0_40], %64 {strides = array<i32>} : memref<128x128xf32, #tpu.memory_space<vmem>>, vector<128x128xf32>,
    %c0_41 = arith.constant 0 : index
    %c0_42 = arith.constant 0 : index
    %66 = vector.load %arg8[%c0_41, %c0_42] : memref<128x128xf32, #tpu.memory_space<vmem>>, vector<128x128xf32>
    %c0_43 = arith.constant 0 : index
    %c0_44 = arith.constant 0 : index
    %67 = vector.load %arg7[%c0_43, %c0_44] : memref<1x128xf32, #tpu.memory_space<vmem>>, vector<1x128xf32>
    %68 = vector.broadcast %67 : vector<1x128xf32> to vector<128x128xf32>
    %69 = arith.addf %66, %68 : vector<128x128xf32>
    %70 = tpu.iota {dimensions = array<i32: 1>} : vector<128x128xi32>
    %c8_i32 = arith.constant 8 : i32
    %71 = vector.broadcast %c8_i32 : i32 to vector<128x128xi32>
    %72 = arith.cmpi slt, %70, %71 : vector<128x128xi32>
    %cst_45 = arith.constant -1.000000e+30 : f32
    %73 = vector.broadcast %cst_45 : f32 to vector<128x128xf32>
    %74 = arith.select %72, %69, %73 : vector<128x128xi1>, vector<128x128xf32>
    %cst_46 = arith.constant dense<0xFF800000> : vector<128xf32>
    %75 = vector.multi_reduction <maximumf>, %74, %cst_46 [1] : vector<128x128xf32> to vector<128xf32>
    %76 = vector.shape_cast %75 : vector<128xf32> to vector<128x1xf32>
    %77 = vector.broadcast %76 : vector<128x1xf32> to vector<128x128xf32>
    %78 = arith.subf %74, %77 : vector<128x128xf32>
    %79 = math.exp %78 : vector<128x128xf32>
    %cst_47 = arith.constant dense<0.000000e+00> : vector<128xf32>
    %80 = vector.multi_reduction <add>, %79, %cst_47 [1] : vector<128x128xf32> to vector<128xf32>
    %81 = vector.shape_cast %80 : vector<128xf32> to vector<128x1xf32>
    %82 = math.log %81 : vector<128x1xf32>
    %83 = vector.broadcast %82 : vector<128x1xf32> to vector<128x128xf32>
    %84 = arith.subf %78, %83 : vector<128x128xf32>
    %c0_48 = arith.constant 0 : index
    %c0_49 = arith.constant 0 : index
    %85 = vector.load %arg8[%c0_48, %c0_49] : memref<128x128xf32, #tpu.memory_space<vmem>>, vector<128x128xf32>
    tpu.vector_store %arg8[%c0_48, %c0_49], %84 {strides = array<i32>} : memref<128x128xf32, #tpu.memory_space<vmem>>, vector<128x128xf32>,
    return
  }
}

</mosaic_0001>

<llo_original>
// kernel: _akgnn_forward_impl.1
$region0: #{_akgnn_forward_impl.1}
  #allocation0 [shape = 'u32[]', space=smem, size = 0x4, offset = 0x4, fixed_abs, tag = 'smem constant byte address 0x4 - core index']
  #allocation1 [shape = 'u32[72,128]{1,0:T(1,128)}', space=vmem, size = 0x9000, scoped, tag = 'internal scratch']
  #allocation2 [shape = 'f32[128,128]{1,0:T(8,128)}', space=vmem, size = 0x10000, scoped, tag = 'scratch operand']
  %s0 = inlined_call_operand.vmem [shape: f32[4], index: 0, kind: input, shape index: {}]
  %s1 = inlined_call_operand.vmem [shape: bf16[128,128], index: 1, kind: input, shape index: {}]
  %s2 = inlined_call_operand.vmem [shape: bf16[128,128], index: 2, kind: input, shape index: {}]
  %s3 = inlined_call_operand.vmem [shape: f32[128,1], index: 3, kind: input, shape index: {}]
  %s4 = inlined_call_operand.vmem [shape: bf16[128,128], index: 4, kind: input, shape index: {}]
  %s5 = inlined_call_operand.vmem [shape: f32[1,128], index: 5, kind: input, shape index: {}]
  %s6 = inlined_call_operand.vmem [shape: bf16[256,128], index: 6, kind: input, shape index: {}]
  %s7 = inlined_call_operand.vmem [shape: f32[1,128], index: 7, kind: input, shape index: {}]
  %s8 = inlined_call_operand.vmem [shape: f32[128,128], index: 8, kind: output, shape index: {}]
  %s9 = sld [smem:[#allocation0]]
  $region46: #{_akgnn_forward_impl.1} parent=0
    _
  %s11 = ssub.s32 1, %s9
  %s12 = scalar_select 0, %s11, %s9
  $region1: #{_akgnn_forward_impl.1} parent=0
    #allocation3 [shape = 'u8[512]{0}', space=smem, size = 0x200, scoped, tag = 'input window, operand 0, single buffered']
    #allocation4 [shape = 's32[1]{0}', space=sflag, size = 0x4, scoped, tag = 'scoped memory for _akgnn_forward_impl.1']
    %13 = vsyncpa [#allocation4], 0
    // Predicated region
    $region2: #{_akgnn_forward_impl.1} parent=1 // pred_check
      _
    $region3: #{_akgnn_forward_impl.1} parent=1 // pred_check_branch
      %15 = sbr.rel (0) target = $region5
    $region4: #{_akgnn_forward_impl.1} parent=1 // pred_region
      %17 = vsyncadd [#allocation4], 0
      %s19 = sshll.u32 %s0, 4
      %s20 = int_to_ptr.vmem [resolvable:$true] %s19
      %22 = dma.vmem_to_smem %s20, 16, [#allocation3], [#allocation4]
    $region5: #{_akgnn_forward_impl.1} parent=1 // pred_fallthru
      _
    // Predicated region
    $region6: #{_akgnn_forward_impl.1} parent=1 // pred_check
      _
    $region7: #{_akgnn_forward_impl.1} parent=1 // pred_check_branch
      %24 = sbr.rel (0) target = $region9
    $region8: #{_akgnn_forward_impl.1} parent=1 // pred_region
      _
    $region9: #{_akgnn_forward_impl.1} parent=1 // pred_fallthru
      _
    // Predicated region
    $region10: #{_akgnn_forward_impl.1} parent=1 // pred_check
      _
    $region11: #{_akgnn_forward_impl.1} parent=1 // pred_check_branch
      %26 = sbr.rel (0) target = $region13
    $region12: #{_akgnn_forward_impl.1} parent=1 // pred_region
      _
    $region13: #{_akgnn_forward_impl.1} parent=1 // pred_fallthru
      _
    // Predicated region
    $region14: #{_akgnn_forward_impl.1} parent=1 // pred_check
      _
    $region15: #{_akgnn_forward_impl.1} parent=1 // pred_check_branch
      %28 = sbr.rel (0) target = $region17
    $region16: #{_akgnn_forward_impl.1} parent=1 // pred_region
      _
    $region17: #{_akgnn_forward_impl.1} parent=1 // pred_fallthru
      _
    // Predicated region
    $region18: #{_akgnn_forward_impl.1} parent=1 // pred_check
      _
    $region19: #{_akgnn_forward_impl.1} parent=1 // pred_check_branch
      %30 = sbr.rel (0) target = $region21
    $region20: #{_akgnn_forward_impl.1} parent=1 // pred_region
      _
    $region21: #{_akgnn_forward_impl.1} parent=1 // pred_fallthru
      _
    // Predicated region
    $region22: #{_akgnn_forward_impl.1} parent=1 // pred_check
      _
    $region23: #{_akgnn_forward_impl.1} parent=1 // pred_check_branch
      %32 = sbr.rel (0) target = $region25
    $region24: #{_akgnn_forward_impl.1} parent=1 // pred_region
      _
    $region25: #{_akgnn_forward_impl.1} parent=1 // pred_fallthru
      _
    // Predicated region
    $region26: #{_akgnn_forward_impl.1} parent=1 // pred_check
      _
    $region27: #{_akgnn_forward_impl.1} parent=1 // pred_check_branch
      %34 = sbr.rel (0) target = $region29
    $region28: #{_akgnn_forward_impl.1} parent=1 // pred_region
      _
    $region29: #{_akgnn_forward_impl.1} parent=1 // pred_fallthru
      _
    // Predicated region
    $region30: #{_akgnn_forward_impl.1} parent=1 // pred_check
      _
    $region31: #{_akgnn_forward_impl.1} parent=1 // pred_check_branch
      %36 = sbr.rel (0) target = $region33
    $region32: #{_akgnn_forward_impl.1} parent=1 // pred_region
      _
    $region33: #{_akgnn_forward_impl.1} parent=1 // pred_fallthru
      _
    // Predicated region
    $region34: #{_akgnn_forward_impl.1} parent=1 // pred_check
      _
    $region35: #{_akgnn_forward_impl.1} parent=1 // pred_check_branch
      %38 = sbr.rel (0) target = $region37
    $region36: #{_akgnn_forward_impl.1} parent=1 // pred_region
      %40 = dma.done [#allocation4], 16
    $region37: #{_akgnn_forward_impl.1} parent=1 // pred_fallthru
      _
    %41 = sfence
    %v42 = vld [vmem:[%s1] sm:$0xf]
    %v43 = vld [vmem:[%s1 + $0x4] sm:$0xf]
    %v44 = vld [vmem:[%s1 + $0x8] sm:$0xf]
    %v45 = vld [vmem:[%s1 + $0xc] sm:$0xf]
    %v46 = vld [vmem:[%s1 + $0x10] sm:$0xf]
    %v47 = vld [vmem:[%s1 + $0x14] sm:$0xf]
    %v48 = vld [vmem:[%s1 + $0x18] sm:$0xf]
    %v49 = vld [vmem:[%s1 + $0x1c] sm:$0xf]
    %v50 = vld [vmem:[%s1 + $0x20] sm:$0xf]
    %v51 = vld [vmem:[%s1 + $0x24] sm:$0xf]
    %v52 = vld [vmem:[%s1 + $0x28] sm:$0xf]
    %v53 = vld [vmem:[%s1 + $0x2c] sm:$0xf]
    %v54 = vld [vmem:[%s1 + $0x30] sm:$0xf]
    %v55 = vld [vmem:[%s1 + $0x34] sm:$0xf]
    %v56 = vld [vmem:[%s1 + $0x38] sm:$0xf]
    %v57 = vld [vmem:[%s1 + $0x3c] sm:$0xf]
    %v58 = vld [vmem:[%s4] sm:$0xf]
    %v59 = vld [vmem:[%s4 + $0x4] sm:$0xf]
    %v60 = vld [vmem:[%s4 + $0x8] sm:$0xf]
    %v61 = vld [vmem:[%s4 + $0xc] sm:$0xf]
    %v62 = vld [vmem:[%s4 + $0x10] sm:$0xf]
    %v63 = vld [vmem:[%s4 + $0x14] sm:$0xf]
    %v64 = vld [vmem:[%s4 + $0x18] sm:$0xf]
    %v65 = vld [vmem:[%s4 + $0x1c] sm:$0xf]
    %v66 = vld [vmem:[%s4 + $0x20] sm:$0xf]
    %v67 = vld [vmem:[%s4 + $0x24] sm:$0xf]
    %v68 = vld [vmem:[%s4 + $0x28] sm:$0xf]
    %v69 = vld [vmem:[%s4 + $0x2c] sm:$0xf]
    %v70 = vld [vmem:[%s4 + $0x30] sm:$0xf]
    %v71 = vld [vmem:[%s4 + $0x34] sm:$0xf]
    %v72 = vld [vmem:[%s4 + $0x38] sm:$0xf]
    %v73 = vld [vmem:[%s4 + $0x3c] sm:$0xf]
    %v74 = vld [vmem:[%s5] sm:$0x1]
    %v76 = vperm.slane %v74, 0
    %v94 = vunpack.c.l.b16 %v42
    %v95 = vunpack.c.l.b16 %v43
    %v96 = vunpack.c.l.b16 %v44
    %v97 = vunpack.c.l.b16 %v45
    %v98 = vunpack.c.l.b16 %v46
    %v99 = vunpack.c.l.b16 %v47
    %v100 = vunpack.c.l.b16 %v48
    %v101 = vunpack.c.l.b16 %v49
    %v102 = vunpack.c.l.b16 %v50
    %v103 = vunpack.c.l.b16 %v51
    %v104 = vunpack.c.l.b16 %v52
    %v105 = vunpack.c.l.b16 %v53
    %v106 = vunpack.c.l.b16 %v54
    %v107 = vunpack.c.l.b16 %v55
    %v108 = vunpack.c.l.b16 %v56
    %v109 = vunpack.c.l.b16 %v57
    %v110 = vpack.c.b16 %v95, %v94
    %v111 = vpack.c.b16 %v97, %v96
    %v112 = vpack.c.b16 %v99, %v98
    %v113 = vpack.c.b16 %v101, %v100
    %v114 = vpack.c.b16 %v103, %v102
    %v115 = vpack.c.b16 %v105, %v104
    %v116 = vpack.c.b16 %v107, %v106
    %v117 = vpack.c.b16 %v109, %v108
    %v142 = vunpack.c.l.b16 %v58
    %v143 = vunpack.c.l.b16 %v59
    %v144 = vunpack.c.l.b16 %v60
    %v145 = vunpack.c.l.b16 %v61
    %v146 = vunpack.c.l.b16 %v62
    %v147 = vunpack.c.l.b16 %v63
    %v148 = vunpack.c.l.b16 %v64
    %v149 = vunpack.c.l.b16 %v65
    %v150 = vunpack.c.l.b16 %v66
    %v151 = vunpack.c.l.b16 %v67
    %v152 = vunpack.c.l.b16 %v68
    %v153 = vunpack.c.l.b16 %v69
    %v154 = vunpack.c.l.b16 %v70
    %v155 = vunpack.c.l.b16 %v71
    %v156 = vunpack.c.l.b16 %v72
    %v157 = vunpack.c.l.b16 %v73
    %v158 = vpack.c.b16 %v143, %v142
    %v159 = vpack.c.b16 %v145, %v144
    %v160 = vpack.c.b16 %v147, %v146
    %v161 = vpack.c.b16 %v149, %v148
    %v162 = vpack.c.b16 %v151, %v150
    %v163 = vpack.c.b16 %v153, %v152
    %v164 = vpack.c.b16 %v155, %v154
    %v165 = vpack.c.b16 %v157, %v156
    %174 = vmatpush.bf16.msra.mxu0 %v165
    %175 = vmatpush.bf16.msra.mxu0 %v164
    %176 = vmatpush.bf16.msra.mxu0 %v163
    %177 = vmatpush.bf16.msra.mxu0 %v162
    %178 = vmatpush.bf16.msra.mxu0 %v161
    %179 = vmatpush.bf16.msra.mxu0 %v160
    %180 = vmatpush.bf16.msra.mxu0 %v159
    %181 = vmatpush.bf16.msra.mxu0 %v158
    %182 = vmatmul.bf16.gmra.mxu0 %v110
    %v183 = vpop.f32.mrf.mxu0
    %v184 = vadd.f32 %v76, %v183
    %v185 = vpop.f32.mrf.mxu0
    %v186 = vadd.f32 %v76, %v185
    %187 = vmatmul.bf16.gmra.mxu0 %v111
    %v188 = vpop.f32.mrf.mxu0
    %v189 = vadd.f32 %v76, %v188
    %v190 = vpop.f32.mrf.mxu0
    %v191 = vadd.f32 %v76, %v190
    %192 = vmatmul.bf16.gmra.mxu0 %v112
    %v193 = vpop.f32.mrf.mxu0
    %v194 = vadd.f32 %v76, %v193
    %v195 = vpop.f32.mrf.mxu0
    %v196 = vadd.f32 %v76, %v195
    %197 = vmatmul.bf16.gmra.mxu0 %v113
    %v198 = vpop.f32.mrf.mxu0
    %v199 = vadd.f32 %v76, %v198
    %v200 = vpop.f32.mrf.mxu0
    %v201 = vadd.f32 %v76, %v200
    %202 = vmatmul.bf16.gmra.mxu0 %v114
    %v203 = vpop.f32.mrf.mxu0
    %v204 = vadd.f32 %v76, %v203
    %v205 = vpop.f32.mrf.mxu0
    %v206 = vadd.f32 %v76, %v205
    %207 = vmatmul.bf16.gmra.mxu0 %v115
    %v208 = vpop.f32.mrf.mxu0
    %v209 = vadd.f32 %v76, %v208
    %v210 = vpop.f32.mrf.mxu0
    %v211 = vadd.f32 %v76, %v210
    %212 = vmatmul.bf16.gmra.mxu0 %v116
    %v213 = vpop.f32.mrf.mxu0
    %v214 = vadd.f32 %v76, %v213
    %v215 = vpop.f32.mrf.mxu0
    %v216 = vadd.f32 %v76, %v215
    %217 = vmatmul.bf16.gmra.mxu0 %v117
    %v218 = vpop.f32.mrf.mxu0
    %v219 = vadd.f32 %v76, %v218
    %v220 = vpop.f32.mrf.mxu0
    %v221 = vadd.f32 %v76, %v220
    %222 = vdwg.mxu0
    %v223 = vmax.f32 %v184, 0.0
    %v224 = vmax.f32 %v186, 0.0
    %v225 = vmax.f32 %v189, 0.0
    %v226 = vmax.f32 %v191, 0.0
    %v227 = vmax.f32 %v194, 0.0
    %v228 = vmax.f32 %v196, 0.0
    %v229 = vmax.f32 %v199, 0.0
    %v230 = vmax.f32 %v201, 0.0
    %v231 = vmax.f32 %v204, 0.0
    %v232 = vmax.f32 %v206, 0.0
    %v233 = vmax.f32 %v209, 0.0
    %v234 = vmax.f32 %v211, 0.0
    %v235 = vmax.f32 %v214, 0.0
    %v236 = vmax.f32 %v216, 0.0
    %v237 = vmax.f32 %v219, 0.0
    %v238 = vmax.f32 %v221, 0.0
    %239 = vst [vmem:[#allocation2] sm:$0xff] %v223
    %240 = vst [vmem:[#allocation2 + $0x8] sm:$0xff] %v224
    %241 = vst [vmem:[#allocation2 + $0x10] sm:$0xff] %v225
    %242 = vst [vmem:[#allocation2 + $0x18] sm:$0xff] %v226
    %243 = vst [vmem:[#allocation2 + $0x20] sm:$0xff] %v227
    %244 = vst [vmem:[#allocation2 + $0x28] sm:$0xff] %v228
    %245 = vst [vmem:[#allocation2 + $0x30] sm:$0xff] %v229
    %246 = vst [vmem:[#allocation2 + $0x38] sm:$0xff] %v230
    %247 = vst [vmem:[#allocation2 + $0x40] sm:$0xff] %v231
    %248 = vst [vmem:[#allocation2 + $0x48] sm:$0xff] %v232
    %249 = vst [vmem:[#allocation2 + $0x50] sm:$0xff] %v233
    %250 = vst [vmem:[#allocation2 + $0x58] sm:$0xff] %v234
    %251 = vst [vmem:[#allocation2 + $0x60] sm:$0xff] %v235
    %252 = vst [vmem:[#allocation2 + $0x68] sm:$0xff] %v236
    %253 = vst [vmem:[#allocation2 + $0x70] sm:$0xff] %v237
    %254 = vst [vmem:[#allocation2 + $0x78] sm:$0xff] %v238
    %255 = vst [vmem:[%s8] sm:$0xff] 0.0
    %256 = vst [vmem:[%s8 + $0x8] sm:$0xff] 0.0
    %257 = vst [vmem:[%s8 + $0x10] sm:$0xff] 0.0
    %258 = vst [vmem:[%s8 + $0x18] sm:$0xff] 0.0
    %259 = vst [vmem:[%s8 + $0x20] sm:$0xff] 0.0
    %260 = vst [vmem:[%s8 + $0x28] sm:$0xff] 0.0
    %261 = vst [vmem:[%s8 + $0x30] sm:$0xff] 0.0
    %262 = vst [vmem:[%s8 + $0x38] sm:$0xff] 0.0
    %263 = vst [vmem:[%s8 + $0x40] sm:$0xff] 0.0
    %264 = vst [vmem:[%s8 + $0x48] sm:$0xff] 0.0
    %265 = vst [vmem:[%s8 + $0x50] sm:$0xff] 0.0
    %266 = vst [vmem:[%s8 + $0x58] sm:$0xff] 0.0
    %267 = vst [vmem:[%s8 + $0x60] sm:$0xff] 0.0
    %268 = vst [vmem:[%s8 + $0x68] sm:$0xff] 0.0
    %269 = vst [vmem:[%s8 + $0x70] sm:$0xff] 0.0
    %270 = vst [vmem:[%s8 + $0x78] sm:$0xff] 0.0
    %v271 = vld [vmem:[%s3] sm:$0xff]
    %v272 = vld [vmem:[%s3 + $0x8] sm:$0xff]
    %v273 = vld [vmem:[%s3 + $0x10] sm:$0xff]
    %v274 = vld [vmem:[%s3 + $0x18] sm:$0xff]
    %v275 = vld [vmem:[%s3 + $0x20] sm:$0xff]
    %v276 = vld [vmem:[%s3 + $0x28] sm:$0xff]
    %v277 = vld [vmem:[%s3 + $0x30] sm:$0xff]
    %v278 = vld [vmem:[%s3 + $0x38] sm:$0xff]
    %v279 = vld [vmem:[%s3 + $0x40] sm:$0xff]
    %v280 = vld [vmem:[%s3 + $0x48] sm:$0xff]
    %v281 = vld [vmem:[%s3 + $0x50] sm:$0xff]
    %v282 = vld [vmem:[%s3 + $0x58] sm:$0xff]
    %v283 = vld [vmem:[%s3 + $0x60] sm:$0xff]
    %v284 = vld [vmem:[%s3 + $0x68] sm:$0xff]
    %v285 = vld [vmem:[%s3 + $0x70] sm:$0xff]
    %v286 = vld [vmem:[%s3 + $0x78] sm:$0xff]
    %s287 = sld [smem:[#allocation3]]
    %s288 = sld [smem:[#allocation3 + $0x1]]
    %v289 = vstv %s287
    %v290 = vmul.f32 %v289, %v271
    %v291 = vmul.f32 %v289, %v272
    %v292 = vmul.f32 %v289, %v273
    %v293 = vmul.f32 %v289, %v274
    %v294 = vmul.f32 %v289, %v275
    %v295 = vmul.f32 %v289, %v276
    %v296 = vmul.f32 %v289, %v277
    %v297 = vmul.f32 %v289, %v278
    %v298 = vmul.f32 %v289, %v279
    %v299 = vmul.f32 %v289, %v280
    %v300 = vmul.f32 %v289, %v281
    %v301 = vmul.f32 %v289, %v282
    %v302 = vmul.f32 %v289, %v283
    %v303 = vmul.f32 %v289, %v284
    %v304 = vmul.f32 %v289, %v285
    %v305 = vmul.f32 %v289, %v286
    %v306 = vstv %s288
    %v307 = vadd.f32 %v290, %v306
    %v308 = vadd.f32 %v291, %v306
    %v309 = vadd.f32 %v292, %v306
    %v310 = vadd.f32 %v293, %v306
    %v311 = vadd.f32 %v294, %v306
    %v312 = vadd.f32 %v295, %v306
    %v313 = vadd.f32 %v296, %v306
    %v314 = vadd.f32 %v297, %v306
    %v315 = vadd.f32 %v298, %v306
    %v316 = vadd.f32 %v299, %v306
    %v317 = vadd.f32 %v300, %v306
    %v318 = vadd.f32 %v301, %v306
    %v319 = vadd.f32 %v302, %v306
    %v320 = vadd.f32 %v303, %v306
    %v321 = vadd.f32 %v304, %v306
    %v322 = vadd.f32 %v305, %v306
    %v323 = vrsqrt.pop %v307
    %v324 = vmul.f32 %v323, %v307
    %v325 = vmul.f32 %v324, %v323
    %v326 = vmul.f32 0.5, %v325
    %v327 = vsub.f32 1.5, %v326
    %v328 = vmul.f32 %v323, %v327
    %vm329 = vweird.f32 %v307
    %vm330 = vweird.f32 %v323
    %vm331 = vmor %vm329, %vm330
    %v332 = vsel %vm331, %v323, %v328
    %v333 = vrsqrt.pop %v308
    %v334 = vmul.f32 %v333, %v308
    %v335 = vmul.f32 %v334, %v333
    %v336 = vmul.f32 0.5, %v335
    %v337 = vsub.f32 1.5, %v336
    %v338 = vmul.f32 %v333, %v337
    %vm339 = vweird.f32 %v308
    %vm340 = vweird.f32 %v333
    %vm341 = vmor %vm339, %vm340
    %v342 = vsel %vm341, %v333, %v338
    %v343 = vrsqrt.pop %v309
    %v344 = vmul.f32 %v343, %v309
    %v345 = vmul.f32 %v344, %v343
    %v346 = vmul.f32 0.5, %v345
    %v347 = vsub.f32 1.5, %v346
    %v348 = vmul.f32 %v343, %v347
    %vm349 = vweird.f32 %v309
    %vm350 = vweird.f32 %v343
    %vm351 = vmor %vm349, %vm350
    %v352 = vsel %vm351, %v343, %v348
    %v353 = vrsqrt.pop %v310
    %v354 = vmul.f32 %v353, %v310
    %v355 = vmul.f32 %v354, %v353
    %v356 = vmul.f32 0.5, %v355
    %v357 = vsub.f32 1.5, %v356
    %v358 = vmul.f32 %v353, %v357
    %vm359 = vweird.f32 %v310
    %vm360 = vweird.f32 %v353
    %vm361 = vmor %vm359, %vm360
    %v362 = vsel %vm361, %v353, %v358
    %v363 = vrsqrt.pop %v311
    %v364 = vmul.f32 %v363, %v311
    %v365 = vmul.f32 %v364, %v363
    %v366 = vmul.f32 0.5, %v365
    %v367 = vsub.f32 1.5, %v366
    %v368 = vmul.f32 %v363, %v367
    %vm369 = vweird.f32 %v311
    %vm370 = vweird.f32 %v363
    %vm371 = vmor %vm369, %vm370
    %v372 = vsel %vm371, %v363, %v368
    %v373 = vrsqrt.pop %v312
    %v374 = vmul.f32 %v373, %v312
    %v375 = vmul.f32 %v374, %v373
    %v376 = vmul.f32 0.5, %v375
    %v377 = vsub.f32 1.5, %v376
    %v378 = vmul.f32 %v373, %v377
    %vm379 = vweird.f32 %v312
    %vm380 = vweird.f32 %v373
    %vm381 = vmor %vm379, %vm380
    %v382 = vsel %vm381, %v373, %v378
    %v383 = vrsqrt.pop %v313
    %v384 = vmul.f32 %v383, %v313
    %v385 = vmul.f32 %v384, %v383
    %v386 = vmul.f32 0.5, %v385
    %v387 = vsub.f32 1.5, %v386
    %v388 = vmul.f32 %v383, %v387
    %vm389 = vweird.f32 %v313
    %vm390 = vweird.f32 %v383
    %vm391 = vmor %vm389, %vm390
    %v392 = vsel %vm391, %v383, %v388
    %v393 = vrsqrt.pop %v314
    %v394 = vmul.f32 %v393, %v314
    %v395 = vmul.f32 %v394, %v393
    %v396 = vmul.f32 0.5, %v395
    %v397 = vsub.f32 1.5, %v396
    %v398 = vmul.f32 %v393, %v397
    %vm399 = vweird.f32 %v314
    %vm400 = vweird.f32 %v393
    %vm401 = vmor %vm399, %vm400
    %v402 = vsel %vm401, %v393, %v398
    %v403 = vrsqrt.pop %v315
    %v404 = vmul.f32 %v403, %v315
    %v405 = vmul.f32 %v404, %v403
    %v406 = vmul.f32 0.5, %v405
    %v407 = vsub.f32 1.5, %v406
    %v408 = vmul.f32 %v403, %v407
    %vm409 = vweird.f32 %v315
    %vm410 = vweird.f32 %v403
    %vm411 = vmor %vm409, %vm410
    %v412 = vsel %vm411, %v403, %v408
    %v413 = vrsqrt.pop %v316
    %v414 = vmul.f32 %v413, %v316
    %v415 = vmul.f32 %v414, %v413
    %v416 = vmul.f32 0.5, %v415
    %v417 = vsub.f32 1.5, %v416
    %v418 = vmul.f32 %v413, %v417
    %vm419 = vweird.f32 %v316
    %vm420 = vweird.f32 %v413
    %vm421 = vmor %vm419, %vm420
    %v422 = vsel %vm421, %v413, %v418
    %v423 = vrsqrt.pop %v317
    %v424 = vmul.f32 %v423, %v317
    %v425 = vmul.f32 %v424, %v423
    %v426 = vmul.f32 0.5, %v425
    %v427 = vsub.f32 1.5, %v426
    %v428 = vmul.f32 %v423, %v427
    %vm429 = vweird.f32 %v317
    %vm430 = vweird.f32 %v423
    %vm431 = vmor %vm429, %vm430
    %v432 = vsel %vm431, %v423, %v428
    %v433 = vrsqrt.pop %v318
    %v434 = vmul.f32 %v433, %v318
    %v435 = vmul.f32 %v434, %v433
    %v436 = vmul.f32 0.5, %v435
    %v437 = vsub.f32 1.5, %v436
    %v438 = vmul.f32 %v433, %v437
    %vm439 = vweird.f32 %v318
    %vm440 = vweird.f32 %v433
    %vm441 = vmor %vm439, %vm440
    %v442 = vsel %vm441, %v433, %v438
    %v443 = vrsqrt.pop %v319
    %v444 = vmul.f32 %v443, %v319
    %v445 = vmul.f32 %v444, %v443
    %v446 = vmul.f32 0.5, %v445
    %v447 = vsub.f32 1.5, %v446
    %v448 = vmul.f32 %v443, %v447
    %vm449 = vweird.f32 %v319
    %vm450 = vweird.f32 %v443
    %vm451 = vmor %vm449, %vm450
    %v452 = vsel %vm451, %v443, %v448
    %v453 = vrsqrt.pop %v320
    %v454 = vmul.f32 %v453, %v320
    %v455 = vmul.f32 %v454, %v453
    %v456 = vmul.f32 0.5, %v455
    %v457 = vsub.f32 1.5, %v456
    %v458 = vmul.f32 %v453, %v457
    %vm459 = vweird.f32 %v320
    %vm460 = vweird.f32 %v453
    %vm461 = vmor %vm459, %vm460
    %v462 = vsel %vm461, %v453, %v458
    %v463 = vrsqrt.pop %v321
    %v464 = vmul.f32 %v463, %v321
    %v465 = vmul.f32 %v464, %v463
    %v466 = vmul.f32 0.5, %v465
    %v467 = vsub.f32 1.5, %v466
    %v468 = vmul.f32 %v463, %v467
    %vm469 = vweird.f32 %v321
    %vm470 = vweird.f32 %v463
    %vm471 = vmor %vm469, %vm470
    %v472 = vsel %vm471, %v463, %v468
    %v473 = vrsqrt.pop %v322
    %v474 = vmul.f32 %v473, %v322
    %v475 = vmul.f32 %v474, %v473
    %v476 = vmul.f32 0.5, %v475
    %v477 = vsub.f32 1.5, %v476
    %v478 = vmul.f32 %v473, %v477
    %vm479 = vweird.f32 %v322
    %vm480 = vweird.f32 %v473
    %vm481 = vmor %vm479, %vm480
    %v482 = vsel %vm481, %v473, %v478
    %v483 = vld [vmem:[#allocation2] sm:$0xff]
    %v484 = vld [vmem:[#allocation2 + $0x8] sm:$0xff]
    %v485 = vld [vmem:[#allocation2 + $0x10] sm:$0xff]
    %v486 = vld [vmem:[#allocation2 + $0x18] sm:$0xff]
    %v487 = vld [vmem:[#allocation2 + $0x20] sm:$0xff]
    %v488 = vld [vmem:[#allocation2 + $0x28] sm:$0xff]
    %v489 = vld [vmem:[#allocation2 + $0x30] sm:$0xff]
    %v490 = vld [vmem:[#allocation2 + $0x38] sm:$0xff]
    %v491 = vld [vmem:[#allocation2 + $0x40] sm:$0xff]
    %v492 = vld [vmem:[#allocation2 + $0x48] sm:$0xff]
    %v493 = vld [vmem:[#allocation2 + $0x50] sm:$0xff]
    %v494 = vld [vmem:[#allocation2 + $0x58] sm:$0xff]
    %v495 = vld [vmem:[#allocation2 + $0x60] sm:$0xff]
    %v496 = vld [vmem:[#allocation2 + $0x68] sm:$0xff]
    %v497 = vld [vmem:[#allocation2 + $0x70] sm:$0xff]
    %v498 = vld [vmem:[#allocation2 + $0x78] sm:$0xff]
    %500 = vset.pattern.permute.xlu0 0
    %501 = vperm.xlu0 %500, %v332
    %v502 = vpop.permute.xlu0 %501
    %505 = vset.pattern.permute.xlu0 0
    %506 = vperm.xlu0 %505, %v342
    %v507 = vpop.permute.xlu0 %506
    %510 = vset.pattern.permute.xlu0 0
    %511 = vperm.xlu0 %510, %v352
    %v512 = vpop.permute.xlu0 %511
    %515 = vset.pattern.permute.xlu0 0
    %516 = vperm.xlu0 %515, %v362
    %v517 = vpop.permute.xlu0 %516
    %520 = vset.pattern.permute.xlu0 0
    %521 = vperm.xlu0 %520, %v372
    %v522 = vpop.permute.xlu0 %521
    %525 = vset.pattern.permute.xlu0 0
    %526 = vperm.xlu0 %525, %v382
    %v527 = vpop.permute.xlu0 %526
    %530 = vset.pattern.permute.xlu0 0
    %531 = vperm.xlu0 %530, %v392
    %v532 = vpop.permute.xlu0 %531
    %535 = vset.pattern.permute.xlu0 0
    %536 = vperm.xlu0 %535, %v402
    %v537 = vpop.permute.xlu0 %536
    %540 = vset.pattern.permute.xlu0 0
    %541 = vperm.xlu0 %540, %v412
    %v542 = vpop.permute.xlu0 %541
    %545 = vset.pattern.permute.xlu0 0
    %546 = vperm.xlu0 %545, %v422
    %v547 = vpop.permute.xlu0 %546
    %550 = vset.pattern.permute.xlu0 0
    %551 = vperm.xlu0 %550, %v432
    %v552 = vpop.permute.xlu0 %551
    %555 = vset.pattern.permute.xlu0 0
    %556 = vperm.xlu0 %555, %v442
    %v557 = vpop.permute.xlu0 %556
    %560 = vset.pattern.permute.xlu0 0
    %561 = vperm.xlu0 %560, %v452
    %v562 = vpop.permute.xlu0 %561
    %565 = vset.pattern.permute.xlu0 0
    %566 = vperm.xlu0 %565, %v462
    %v567 = vpop.permute.xlu0 %566
    %570 = vset.pattern.permute.xlu0 0
    %571 = vperm.xlu0 %570, %v472
    %v572 = vpop.permute.xlu0 %571
    %575 = vset.pattern.permute.xlu0 0
    %576 = vperm.xlu0 %575, %v482
    %v577 = vpop.permute.xlu0 %576
    %v579 = vmul.f32 %v483, %v502
    %v580 = vmul.f32 %v484, %v507
    %v581 = vmul.f32 %v485, %v512
    %v582 = vmul.f32 %v486, %v517
    %v583 = vmul.f32 %v487, %v522
    %v584 = vmul.f32 %v488, %v527
    %v585 = vmul.f32 %v489, %v532
    %v586 = vmul.f32 %v490, %v537
    %v587 = vmul.f32 %v491, %v542
    %v588 = vmul.f32 %v492, %v547
    %v589 = vmul.f32 %v493, %v552
    %v590 = vmul.f32 %v494, %v557
    %v591 = vmul.f32 %v495, %v562
    %v592 = vmul.f32 %v496, %v567
    %v593 = vmul.f32 %v497, %v572
    %v594 = vmul.f32 %v498, %v577
    %v595 = vld [vmem:[%s2] sm:$0xf]
    %v596 = vld [vmem:[%s2 + $0x4] sm:$0xf]
    %v597 = vld [vmem:[%s2 + $0x8] sm:$0xf]
    %v598 = vld [vmem:[%s2 + $0xc] sm:$0xf]
    %v599 = vld [vmem:[%s2 + $0x10] sm:$0xf]
    %v600 = vld [vmem:[%s2 + $0x14] sm:$0xf]
    %v601 = vld [vmem:[%s2 + $0x18] sm:$0xf]
    %v602 = vld [vmem:[%s2 + $0x1c] sm:$0xf]
    %v603 = vld [vmem:[%s2 + $0x20] sm:$0xf]
    %v604 = vld [vmem:[%s2 + $0x24] sm:$0xf]
    %v605 = vld [vmem:[%s2 + $0x28] sm:$0xf]
    %v606 = vld [vmem:[%s2 + $0x2c] sm:$0xf]
    %v607 = vld [vmem:[%s2 + $0x30] sm:$0xf]
    %v608 = vld [vmem:[%s2 + $0x34] sm:$0xf]
    %v609 = vld [vmem:[%s2 + $0x38] sm:$0xf]
    %v610 = vld [vmem:[%s2 + $0x3c] sm:$0xf]
    %v611 = vpack.c.bf16 %v580, %v579
    %v612 = vpack.c.bf16 %v582, %v581
    %v613 = vpack.c.bf16 %v584, %v583
    %v614 = vpack.c.bf16 %v586, %v585
    %v615 = vpack.c.bf16 %v588, %v587
    %v616 = vpack.c.bf16 %v590, %v589
    %v617 = vpack.c.bf16 %v592, %v591
    %v618 = vpack.c.bf16 %v594, %v593
    %v635 = vunpack.c.l.b16 %v595
    %v636 = vunpack.c.l.b16 %v596
    %v637 = vunpack.c.l.b16 %v597
    %v638 = vunpack.c.l.b16 %v598
    %v639 = vunpack.c.l.b16 %v599
    %v640 = vunpack.c.l.b16 %v600
    %v641 = vunpack.c.l.b16 %v601
    %v642 = vunpack.c.l.b16 %v602
    %v643 = vunpack.c.l.b16 %v603
    %v644 = vunpack.c.l.b16 %v604
    %v645 = vunpack.c.l.b16 %v605
    %v646 = vunpack.c.l.b16 %v606
    %v647 = vunpack.c.l.b16 %v607
    %v648 = vunpack.c.l.b16 %v608
    %v649 = vunpack.c.l.b16 %v609
    %v650 = vunpack.c.l.b16 %v610
    %v651 = vpack.c.b16 %v636, %v635
    %v652 = vpack.c.b16 %v638, %v637
    %v653 = vpack.c.b16 %v640, %v639
    %v654 = vpack.c.b16 %v642, %v641
    %v655 = vpack.c.b16 %v644, %v643
    %v656 = vpack.c.b16 %v646, %v645
    %v657 = vpack.c.b16 %v648, %v647
    %v658 = vpack.c.b16 %v650, %v649
    %667 = vmatpush.bf16.msra.mxu0 %v618
    %668 = vmatpush.bf16.msra.mxu0 %v617
    %669 = vmatpush.bf16.msra.mxu0 %v616
    %670 = vmatpush.bf16.msra.mxu0 %v615
    %671 = vmatpush.bf16.msra.mxu0 %v614
    %672 = vmatpush.bf16.msra.mxu0 %v613
    %673 = vmatpush.bf16.msra.mxu0 %v612
    %674 = vmatpush.bf16.msra.mxu0 %v611
    %675 = vmatmul.bf16.gmra.mxu0 %v651
    %v676 = vpop.f32.mrf.mxu0
    %v677 = vadd.f32 0.0, %v676
    %v678 = vpop.f32.mrf.mxu0
    %v679 = vadd.f32 0.0, %v678
    %680 = vmatmul.bf16.gmra.mxu0 %v652
    %v681 = vpop.f32.mrf.mxu0
    %v682 = vadd.f32 0.0, %v681
    %v683 = vpop.f32.mrf.mxu0
    %v684 = vadd.f32 0.0, %v683
    %685 = vmatmul.bf16.gmra.mxu0 %v653
    %v686 = vpop.f32.mrf.mxu0
    %v687 = vadd.f32 0.0, %v686
    %v688 = vpop.f32.mrf.mxu0
    %v689 = vadd.f32 0.0, %v688
    %690 = vmatmul.bf16.gmra.mxu0 %v654
    %v691 = vpop.f32.mrf.mxu0
    %v692 = vadd.f32 0.0, %v691
    %v693 = vpop.f32.mrf.mxu0
    %v694 = vadd.f32 0.0, %v693
    %695 = vmatmul.bf16.gmra.mxu0 %v655
    %v696 = vpop.f32.mrf.mxu0
    %v697 = vadd.f32 0.0, %v696
    %v698 = vpop.f32.mrf.mxu0
    %v699 = vadd.f32 0.0, %v698
    %700 = vmatmul.bf16.gmra.mxu0 %v656
    %v701 = vpop.f32.mrf.mxu0
    %v702 = vadd.f32 0.0, %v701
    %v703 = vpop.f32.mrf.mxu0
    %v704 = vadd.f32 0.0, %v703
    %705 = vmatmul.bf16.gmra.mxu0 %v657
    %v706 = vpop.f32.mrf.mxu0
    %v707 = vadd.f32 0.0, %v706
    %v708 = vpop.f32.mrf.mxu0
    %v709 = vadd.f32 0.0, %v708
    %710 = vmatmul.bf16.gmra.mxu0 %v658
    %v711 = vpop.f32.mrf.mxu0
    %v712 = vadd.f32 0.0, %v711
    %v713 = vpop.f32.mrf.mxu0
    %v714 = vadd.f32 0.0, %v713
    %715 = vdwg.mxu0
    %v716 = vmul.f32 %v289, %v677
    %v717 = vmul.f32 %v289, %v679
    %v718 = vmul.f32 %v289, %v682
    %v719 = vmul.f32 %v289, %v684
    %v720 = vmul.f32 %v289, %v687
    %v721 = vmul.f32 %v289, %v689
    %v722 = vmul.f32 %v289, %v692
    %v723 = vmul.f32 %v289, %v694
    %v724 = vmul.f32 %v289, %v697
    %v725 = vmul.f32 %v289, %v699
    %v726 = vmul.f32 %v289, %v702
    %v727 = vmul.f32 %v289, %v704
    %v728 = vmul.f32 %v289, %v707
    %v729 = vmul.f32 %v289, %v709
    %v730 = vmul.f32 %v289, %v712
    %v731 = vmul.f32 %v289, %v714
    %v732 = vmul.f32 %v306, %v579
    %v733 = vmul.f32 %v306, %v580
    %v734 = vmul.f32 %v306, %v581
    %v735 = vmul.f32 %v306, %v582
    %v736 = vmul.f32 %v306, %v583
    %v737 = vmul.f32 %v306, %v584
    %v738 = vmul.f32 %v306, %v585
    %v739 = vmul.f32 %v306, %v586
    %v740 = vmul.f32 %v306, %v587
    %v741 = vmul.f32 %v306, %v588
    %v742 = vmul.f32 %v306, %v589
    %v743 = vmul.f32 %v306, %v590
    %v744 = vmul.f32 %v306, %v591
    %v745 = vmul.f32 %v306, %v592
    %v746 = vmul.f32 %v306, %v593
    %v747 = vmul.f32 %v306, %v594
    %v748 = vadd.f32 %v716, %v732
    %v749 = vadd.f32 %v717, %v733
    %v750 = vadd.f32 %v718, %v734
    %v751 = vadd.f32 %v719, %v735
    %v752 = vadd.f32 %v720, %v736
    %v753 = vadd.f32 %v721, %v737
    %v754 = vadd.f32 %v722, %v738
    %v755 = vadd.f32 %v723, %v739
    %v756 = vadd.f32 %v724, %v740
    %v757 = vadd.f32 %v725, %v741
    %v758 = vadd.f32 %v726, %v742
    %v759 = vadd.f32 %v727, %v743
    %v760 = vadd.f32 %v728, %v744
    %v761 = vadd.f32 %v729, %v745
    %v762 = vadd.f32 %v730, %v746
    %v763 = vadd.f32 %v731, %v747
    %v764 = vmul.f32 %v748, %v502
    %v765 = vmul.f32 %v749, %v507
    %v766 = vmul.f32 %v750, %v512
    %v767 = vmul.f32 %v751, %v517
    %v768 = vmul.f32 %v752, %v522
    %v769 = vmul.f32 %v753, %v527
    %v770 = vmul.f32 %v754, %v532
    %v771 = vmul.f32 %v755, %v537
    %v772 = vmul.f32 %v756, %v542
    %v773 = vmul.f32 %v757, %v547
    %v774 = vmul.f32 %v758, %v552
    %v775 = vmul.f32 %v759, %v557
    %v776 = vmul.f32 %v760, %v562
    %v777 = vmul.f32 %v761, %v567
    %v778 = vmul.f32 %v762, %v572
    %v779 = vmul.f32 %v763, %v577
    %780 = vst [vmem:[#allocation2] sm:$0xff] %v764
    %781 = vst [vmem:[#allocation2 + $0x8] sm:$0xff] %v765
    %782 = vst [vmem:[#allocation2 + $0x10] sm:$0xff] %v766
    %783 = vst [vmem:[#allocation2 + $0x18] sm:$0xff] %v767
    %784 = vst [vmem:[#allocation2 + $0x20] sm:$0xff] %v768
    %785 = vst [vmem:[#allocation2 + $0x28] sm:$0xff] %v769
    %786 = vst [vmem:[#allocation2 + $0x30] sm:$0xff] %v770
    %787 = vst [vmem:[#allocation2 + $0x38] sm:$0xff] %v771
    %788 = vst [vmem:[#allocation2 + $0x40] sm:$0xff] %v772
    %789 = vst [vmem:[#allocation2 + $0x48] sm:$0xff] %v773
    %790 = vst [vmem:[#allocation2 + $0x50] sm:$0xff] %v774
    %791 = vst [vmem:[#allocation2 + $0x58] sm:$0xff] %v775
    %792 = vst [vmem:[#allocation2 + $0x60] sm:$0xff] %v776
    %793 = vst [vmem:[#allocation2 + $0x68] sm:$0xff] %v777
    %794 = vst [vmem:[#allocation2 + $0x70] sm:$0xff] %v778
    %795 = vst [vmem:[#allocation2 + $0x78] sm:$0xff] %v779
    %v796 = vld [vmem:[%s8] sm:$0xff]
    %v797 = vld [vmem:[%s8 + $0x8] sm:$0xff]
    %v798 = vld [vmem:[%s8 + $0x10] sm:$0xff]
    %v799 = vld [vmem:[%s8 + $0x18] sm:$0xff]
    %v800 = vld [vmem:[%s8 + $0x20] sm:$0xff]
    %v801 = vld [vmem:[%s8 + $0x28] sm:$0xff]
    %v802 = vld [vmem:[%s8 + $0x30] sm:$0xff]
    %v803 = vld [vmem:[%s8 + $0x38] sm:$0xff]
    %v804 = vld [vmem:[%s8 + $0x40] sm:$0xff]
    %v805 = vld [vmem:[%s8 + $0x48] sm:$0xff]
    %v806 = vld [vmem:[%s8 + $0x50] sm:$0xff]
    %v807 = vld [vmem:[%s8 + $0x58] sm:$0xff]
    %v808 = vld [vmem:[%s8 + $0x60] sm:$0xff]
    %v809 = vld [vmem:[%s8 + $0x68] sm:$0xff]
    %v810 = vld [vmem:[%s8 + $0x70] sm:$0xff]
    %v811 = vld [vmem:[%s8 + $0x78] sm:$0xff]
    %v812 = vpack.c.bf16 %v765, %v764
    %v813 = vpack.c.bf16 %v767, %v766
    %v814 = vpack.c.bf16 %v769, %v768
    %v815 = vpack.c.bf16 %v771, %v770
    %v816 = vpack.c.bf16 %v773, %v772
    %v817 = vpack.c.bf16 %v775, %v774
    %v818 = vpack.c.bf16 %v777, %v776
    %v819 = vpack.c.bf16 %v779, %v778
    %v820 = vld [vmem:[%s6] sm:$0xf]
    %v821 = vld [vmem:[%s6 + $0x4] sm:$0xf]
    %v822 = vld [vmem:[%s6 + $0x8] sm:$0xf]
    %v823 = vld [vmem:[%s6 + $0xc] sm:$0xf]
    %v824 = vld [vmem:[%s6 + $0x10] sm:$0xf]
    %v825 = vld [vmem:[%s6 + $0x14] sm:$0xf]
    %v826 = vld [vmem:[%s6 + $0x18] sm:$0xf]
    %v827 = vld [vmem:[%s6 + $0x1c] sm:$0xf]
    %v828 = vld [vmem:[%s6 + $0x20] sm:$0xf]
    %v829 = vld [vmem:[%s6 + $0x24] sm:$0xf]
    %v830 = vld [vmem:[%s6 + $0x28] sm:$0xf]
    %v831 = vld [vmem:[%s6 + $0x2c] sm:$0xf]
    %v832 = vld [vmem:[%s6 + $0x30] sm:$0xf]
    %v833 = vld [vmem:[%s6 + $0x34] sm:$0xf]
    %v834 = vld [vmem:[%s6 + $0x38] sm:$0xf]
    %v835 = vld [vmem:[%s6 + $0x3c] sm:$0xf]
    %v852 = vunpack.c.l.b16 %v820
    %v853 = vunpack.c.l.b16 %v821
    %v854 = vunpack.c.l.b16 %v822
    %v855 = vunpack.c.l.b16 %v823
    %v856 = vunpack.c.l.b16 %v824
    %v857 = vunpack.c.l.b16 %v825
    %v858 = vunpack.c.l.b16 %v826
    %v859 = vunpack.c.l.b16 %v827
    %v860 = vunpack.c.l.b16 %v828
    %v861 = vunpack.c.l.b16 %v829
    %v862 = vunpack.c.l.b16 %v830
    %v863 = vunpack.c.l.b16 %v831
    %v864 = vunpack.c.l.b16 %v832
    %v865 = vunpack.c.l.b16 %v833
    %v866 = vunpack.c.l.b16 %v834
    %v867 = vunpack.c.l.b16 %v835
    %v868 = vpack.c.b16 %v853, %v852
    %v869 = vpack.c.b16 %v855, %v854
    %v870 = vpack.c.b16 %v857, %v856
    %v871 = vpack.c.b16 %v859, %v858
    %v872 = vpack.c.b16 %v861, %v860
    %v873 = vpack.c.b16 %v863, %v862
    %v874 = vpack.c.b16 %v865, %v864
    %v875 = vpack.c.b16 %v867, %v866
    %884 = vmatpush.bf16.msra.mxu0 %v875
    %885 = vmatpush.bf16.msra.mxu0 %v874
    %886 = vmatpush.bf16.msra.mxu0 %v873
    %887 = vmatpush.bf16.msra.mxu0 %v872
    %888 = vmatpush.bf16.msra.mxu0 %v871
    %889 = vmatpush.bf16.msra.mxu0 %v870
    %890 = vmatpush.bf16.msra.mxu0 %v869
    %891 = vmatpush.bf16.msra.mxu0 %v868
    %892 = vmatmul.bf16.gmra.mxu0 %v812
    %v893 = vpop.f32.mrf.mxu0
    %v894 = vadd.f32 0.0, %v893
    %v895 = vpop.f32.mrf.mxu0
    %v896 = vadd.f32 0.0, %v895
    %897 = vmatmul.bf16.gmra.mxu0 %v813
    %v898 = vpop.f32.mrf.mxu0
    %v899 = vadd.f32 0.0, %v898
    %v900 = vpop.f32.mrf.mxu0
    %v901 = vadd.f32 0.0, %v900
    %902 = vmatmul.bf16.gmra.mxu0 %v814
    %v903 = vpop.f32.mrf.mxu0
    %v904 = vadd.f32 0.0, %v903
    %v905 = vpop.f32.mrf.mxu0
    %v906 = vadd.f32 0.0, %v905
    %907 = vmatmul.bf16.gmra.mxu0 %v815
    %v908 = vpop.f32.mrf.mxu0
    %v909 = vadd.f32 0.0, %v908
    %v910 = vpop.f32.mrf.mxu0
    %v911 = vadd.f32 0.0, %v910
    %912 = vmatmul.bf16.gmra.mxu0 %v816
    %v913 = vpop.f32.mrf.mxu0
    %v914 = vadd.f32 0.0, %v913
    %v915 = vpop.f32.mrf.mxu0
    %v916 = vadd.f32 0.0, %v915
    %917 = vmatmul.bf16.gmra.mxu0 %v817
    %v918 = vpop.f32.mrf.mxu0
    %v919 = vadd.f32 0.0, %v918
    %v920 = vpop.f32.mrf.mxu0
    %v921 = vadd.f32 0.0, %v920
    %922 = vmatmul.bf16.gmra.mxu0 %v818
    %v923 = vpop.f32.mrf.mxu0
    %v924 = vadd.f32 0.0, %v923
    %v925 = vpop.f32.mrf.mxu0
    %v926 = vadd.f32 0.0, %v925
    %927 = vmatmul.bf16.gmra.mxu0 %v819
    %v928 = vpop.f32.mrf.mxu0
    %v929 = vadd.f32 0.0, %v928
    %v930 = vpop.f32.mrf.mxu0
    %v931 = vadd.f32 0.0, %v930
    %932 = vdwg.mxu0
    %v933 = vadd.f32 %v796, %v894
    %v934 = vadd.f32 %v797, %v896
    %v935 = vadd.f32 %v798, %v899
    %v936 = vadd.f32 %v799, %v901
    %v937 = vadd.f32 %v800, %v904
    %v938 = vadd.f32 %v801, %v906
    %v939 = vadd.f32 %v802, %v909
    %v940 = vadd.f32 %v803, %v911
    %v941 = vadd.f32 %v804, %v914
    %v942 = vadd.f32 %v805, %v916
    %v943 = vadd.f32 %v806, %v919
    %v944 = vadd.f32 %v807, %v921
    %v945 = vadd.f32 %v808, %v924
    %v946 = vadd.f32 %v809, %v926
    %v947 = vadd.f32 %v810, %v929
    %v948 = vadd.f32 %v811, %v931
    %949 = vst [vmem:[%s8] sm:$0xff] %v933
    %950 = vst [vmem:[%s8 + $0x8] sm:$0xff] %v934
    %951 = vst [vmem:[%s8 + $0x10] sm:$0xff] %v935
    %952 = vst [vmem:[%s8 + $0x18] sm:$0xff] %v936
    %953 = vst [vmem:[%s8 + $0x20] sm:$0xff] %v937
    %954 = vst [vmem:[%s8 + $0x28] sm:$0xff] %v938
    %955 = vst [vmem:[%s8 + $0x30] sm:$0xff] %v939
    %956 = vst [vmem:[%s8 + $0x38] sm:$0xff] %v940
    %957 = vst [vmem:[%s8 + $0x40] sm:$0xff] %v941
    %958 = vst [vmem:[%s8 + $0x48] sm:$0xff] %v942
    %959 = vst [vmem:[%s8 + $0x50] sm:$0xff] %v943
    %960 = vst [vmem:[%s8 + $0x58] sm:$0xff] %v944
    %961 = vst [vmem:[%s8 + $0x60] sm:$0xff] %v945
    %962 = vst [vmem:[%s8 + $0x68] sm:$0xff] %v946
    %963 = vst [vmem:[%s8 + $0x70] sm:$0xff] %v947
    %964 = vst [vmem:[%s8 + $0x78] sm:$0xff] %v948
    %s965 = sld [smem:[#allocation3 + $0x2]]
    %s966 = sld [smem:[#allocation3 + $0x3]]
    %v967 = vstv %s965
    %v968 = vmul.f32 %v967, %v271
    %v969 = vmul.f32 %v967, %v272
    %v970 = vmul.f32 %v967, %v273
    %v971 = vmul.f32 %v967, %v274
    %v972 = vmul.f32 %v967, %v275
    %v973 = vmul.f32 %v967, %v276
    %v974 = vmul.f32 %v967, %v277
    %v975 = vmul.f32 %v967, %v278
    %v976 = vmul.f32 %v967, %v279
    %v977 = vmul.f32 %v967, %v280
    %v978 = vmul.f32 %v967, %v281
    %v979 = vmul.f32 %v967, %v282
    %v980 = vmul.f32 %v967, %v283
    %v981 = vmul.f32 %v967, %v284
    %v982 = vmul.f32 %v967, %v285
    %v983 = vmul.f32 %v967, %v286
    %v984 = vstv %s966
    %v985 = vadd.f32 %v968, %v984
    %v986 = vadd.f32 %v969, %v984
    %v987 = vadd.f32 %v970, %v984
    %v988 = vadd.f32 %v971, %v984
    %v989 = vadd.f32 %v972, %v984
    %v990 = vadd.f32 %v973, %v984
    %v991 = vadd.f32 %v974, %v984
    %v992 = vadd.f32 %v975, %v984
    %v993 = vadd.f32 %v976, %v984
    %v994 = vadd.f32 %v977, %v984
    %v995 = vadd.f32 %v978, %v984
    %v996 = vadd.f32 %v979, %v984
    %v997 = vadd.f32 %v980, %v984
    %v998 = vadd.f32 %v981, %v984
    %v999 = vadd.f32 %v982, %v984
    %v1000 = vadd.f32 %v983, %v984
    %v1001 = vrsqrt.pop %v985
    %v1002 = vmul.f32 %v1001, %v985
    %v1003 = vmul.f32 %v1002, %v1001
    %v1004 = vmul.f32 0.5, %v1003
    %v1005 = vsub.f32 1.5, %v1004
    %v1006 = vmul.f32 %v1001, %v1005
    %vm1007 = vweird.f32 %v985
    %vm1008 = vweird.f32 %v1001
    %vm1009 = vmor %vm1007, %vm1008
    %v1010 = vsel %vm1009, %v1001, %v1006
    %v1011 = vrsqrt.pop %v986
    %v1012 = vmul.f32 %v1011, %v986
    %v1013 = vmul.f32 %v1012, %v1011
    %v1014 = vmul.f32 0.5, %v1013
    %v1015 = vsub.f32 1.5, %v1014
    %v1016 = vmul.f32 %v1011, %v1015
    %vm1017 = vweird.f32 %v986
    %vm1018 = vweird.f32 %v1011
    %vm1019 = vmor %vm1017, %vm1018
    %v1020 = vsel %vm1019, %v1011, %v1016
    %v1021 = vrsqrt.pop %v987
    %v1022 = vmul.f32 %v1021, %v987
    %v1023 = vmul.f32 %v1022, %v1021
    %v1024 = vmul.f32 0.5, %v1023
    %v1025 = vsub.f32 1.5, %v1024
    %v1026 = vmul.f32 %v1021, %v1025
    %vm1027 = vweird.f32 %v987
    %vm1028 = vweird.f32 %v1021
    %vm1029 = vmor %vm1027, %vm1028
    %v1030 = vsel %vm1029, %v1021, %v1026
    %v1031 = vrsqrt.pop %v988
    %v1032 = vmul.f32 %v1031, %v988
    %v1033 = vmul.f32 %v1032, %v1031
    %v1034 = vmul.f32 0.5, %v1033
    %v1035 = vsub.f32 1.5, %v1034
    %v1036 = vmul.f32 %v1031, %v1035
    %vm1037 = vweird.f32 %v988
    %vm1038 = vweird.f32 %v1031
    %vm1039 = vmor %vm1037, %vm1038
    %v1040 = vsel %vm1039, %v1031, %v1036
    %v1041 = vrsqrt.pop %v989
    %v1042 = vmul.f32 %v1041, %v989
    %v1043 = vmul.f32 %v1042, %v1041
    %v1044 = vmul.f32 0.5, %v1043
    %v1045 = vsub.f32 1.5, %v1044
    %v1046 = vmul.f32 %v1041, %v1045
    %vm1047 = vweird.f32 %v989
    %vm1048 = vweird.f32 %v1041
    %vm1049 = vmor %vm1047, %vm1048
    %v1050 = vsel %vm1049, %v1041, %v1046
    %v1051 = vrsqrt.pop %v990
    %v1052 = vmul.f32 %v1051, %v990
    %v1053 = vmul.f32 %v1052, %v1051
    %v1054 = vmul.f32 0.5, %v1053
    %v1055 = vsub.f32 1.5, %v1054
    %v1056 = vmul.f32 %v1051, %v1055
    %vm1057 = vweird.f32 %v990
    %vm1058 = vweird.f32 %v1051
    %vm1059 = vmor %vm1057, %vm1058
    %v1060 = vsel %vm1059, %v1051, %v1056
    %v1061 = vrsqrt.pop %v991
    %v1062 = vmul.f32 %v1061, %v991
    %v1063 = vmul.f32 %v1062, %v1061
    %v1064 = vmul.f32 0.5, %v1063
    %v1065 = vsub.f32 1.5, %v1064
    %v1066 = vmul.f32 %v1061, %v1065
    %vm1067 = vweird.f32 %v991
    %vm1068 = vweird.f32 %v1061
    %vm1069 = vmor %vm1067, %vm1068
    %v1070 = vsel %vm1069, %v1061, %v1066
    %v1071 = vrsqrt.pop %v992
    %v1072 = vmul.f32 %v1071, %v992
    %v1073 = vmul.f32 %v1072, %v1071
    %v1074 = vmul.f32 0.5, %v1073
    %v1075 = vsub.f32 1.5, %v1074
    %v1076 = vmul.f32 %v1071, %v1075
    %vm1077 = vweird.f32 %v992
    %vm1078 = vweird.f32 %v1071
    %vm1079 = vmor %vm1077, %vm1078
    %v1080 = vsel %vm1079, %v1071, %v1076
    %v1081 = vrsqrt.pop %v993
    %v1082 = vmul.f32 %v1081, %v993
    %v1083 = vmul.f32 %v1082, %v1081
    %v1084 = vmul.f32 0.5, %v1083
    %v1085 = vsub.f32 1.5, %v1084
    %v1086 = vmul.f32 %v1081, %v1085
    %vm1087 = vweird.f32 %v993
    %vm1088 = vweird.f32 %v1081
    %vm1089 = vmor %vm1087, %vm1088
    %v1090 = vsel %vm1089, %v1081, %v1086
    %v1091 = vrsqrt.pop %v994
    %v1092 = vmul.f32 %v1091, %v994
    %v1093 = vmul.f32 %v1092, %v1091
    %v1094 = vmul.f32 0.5, %v1093
    %v1095 = vsub.f32 1.5, %v1094
    %v1096 = vmul.f32 %v1091, %v1095
    %vm1097 = vweird.f32 %v994
    %vm1098 = vweird.f32 %v1091
    %vm1099 = vmor %vm1097, %vm1098
    %v1100 = vsel %vm1099, %v1091, %v1096
    %v1101 = vrsqrt.pop %v995
    %v1102 = vmul.f32 %v1101, %v995
    %v1103 = vmul.f32 %v1102, %v1101
    %v1104 = vmul.f32 0.5, %v1103
    %v1105 = vsub.f32 1.5, %v1104
    %v1106 = vmul.f32 %v1101, %v1105
    %vm1107 = vweird.f32 %v995
    %vm1108 = vweird.f32 %v1101
    %vm1109 = vmor %vm1107, %vm1108
    %v1110 = vsel %vm1109, %v1101, %v1106
    %v1111 = vrsqrt.pop %v996
    %v1112 = vmul.f32 %v1111, %v996
    %v1113 = vmul.f32 %v1112, %v1111
    %v1114 = vmul.f32 0.5, %v1113
    %v1115 = vsub.f32 1.5, %v1114
    %v1116 = vmul.f32 %v1111, %v1115
    %vm1117 = vweird.f32 %v996
    %vm1118 = vweird.f32 %v1111
    %vm1119 = vmor %vm1117, %vm1118
    %v1120 = vsel %vm1119, %v1111, %v1116
    %v1121 = vrsqrt.pop %v997
    %v1122 = vmul.f32 %v1121, %v997
    %v1123 = vmul.f32 %v1122, %v1121
    %v1124 = vmul.f32 0.5, %v1123
    %v1125 = vsub.f32 1.5, %v1124
    %v1126 = vmul.f32 %v1121, %v1125
    %vm1127 = vweird.f32 %v997
    %vm1128 = vweird.f32 %v1121
    %vm1129 = vmor %vm1127, %vm1128
    %v1130 = vsel %vm1129, %v1121, %v1126
    %v1131 = vrsqrt.pop %v998
    %v1132 = vmul.f32 %v1131, %v998
    %v1133 = vmul.f32 %v1132, %v1131
    %v1134 = vmul.f32 0.5, %v1133
    %v1135 = vsub.f32 1.5, %v1134
    %v1136 = vmul.f32 %v1131, %v1135
    %vm1137 = vweird.f32 %v998
    %vm1138 = vweird.f32 %v1131
    %vm1139 = vmor %vm1137, %vm1138
    %v1140 = vsel %vm1139, %v1131, %v1136
    %v1141 = vrsqrt.pop %v999
    %v1142 = vmul.f32 %v1141, %v999
    %v1143 = vmul.f32 %v1142, %v1141
    %v1144 = vmul.f32 0.5, %v1143
    %v1145 = vsub.f32 1.5, %v1144
    %v1146 = vmul.f32 %v1141, %v1145
    %vm1147 = vweird.f32 %v999
    %vm1148 = vweird.f32 %v1141
    %vm1149 = vmor %vm1147, %vm1148
    %v1150 = vsel %vm1149, %v1141, %v1146
    %v1151 = vrsqrt.pop %v1000
    %v1152 = vmul.f32 %v1151, %v1000
    %v1153 = vmul.f32 %v1152, %v1151
    %v1154 = vmul.f32 0.5, %v1153
    %v1155 = vsub.f32 1.5, %v1154
    %v1156 = vmul.f32 %v1151, %v1155
    %vm1157 = vweird.f32 %v1000
    %vm1158 = vweird.f32 %v1151
    %vm1159 = vmor %vm1157, %vm1158
    %v1160 = vsel %vm1159, %v1151, %v1156
    %v1161 = vld [vmem:[#allocation2] sm:$0xff]
    %v1162 = vld [vmem:[#allocation2 + $0x8] sm:$0xff]
    %v1163 = vld [vmem:[#allocation2 + $0x10] sm:$0xff]
    %v1164 = vld [vmem:[#allocation2 + $0x18] sm:$0xff]
    %v1165 = vld [vmem:[#allocation2 + $0x20] sm:$0xff]
    %v1166 = vld [vmem:[#allocation2 + $0x28] sm:$0xff]
    %v1167 = vld [vmem:[#allocation2 + $0x30] sm:$0xff]
    %v1168 = vld [vmem:[#allocation2 + $0x38] sm:$0xff]
    %v1169 = vld [vmem:[#allocation2 + $0x40] sm:$0xff]
    %v1170 = vld [vmem:[#allocation2 + $0x48] sm:$0xff]
    %v1171 = vld [vmem:[#allocation2 + $0x50] sm:$0xff]
    %v1172 = vld [vmem:[#allocation2 + $0x58] sm:$0xff]
    %v1173 = vld [vmem:[#allocation2 + $0x60] sm:$0xff]
    %v1174 = vld [vmem:[#allocation2 + $0x68] sm:$0xff]
    %v1175 = vld [vmem:[#allocation2 + $0x70] sm:$0xff]
    %v1176 = vld [vmem:[#allocation2 + $0x78] sm:$0xff]
    %1178 = vset.pattern.permute.xlu0 0
    %1179 = vperm.xlu0 %1178, %v1010
    %v1180 = vpop.permute.xlu0 %1179
    %1183 = vset.pattern.permute.xlu0 0
    %1184 = vperm.xlu0 %1183, %v1020
    %v1185 = vpop.permute.xlu0 %1184
    %1188 = vset.pattern.permute.xlu0 0
    %1189 = vperm.xlu0 %1188, %v1030
    %v1190 = vpop.permute.xlu0 %1189
    %1193 = vset.pattern.permute.xlu0 0
    %1194 = vperm.xlu0 %1193, %v1040
    %v1195 = vpop.permute.xlu0 %1194
    %1198 = vset.pattern.permute.xlu0 0
    %1199 = vperm.xlu0 %1198, %v1050
    %v1200 = vpop.permute.xlu0 %1199
    %1203 = vset.pattern.permute.xlu0 0
    %1204 = vperm.xlu0 %1203, %v1060
    %v1205 = vpop.permute.xlu0 %1204
    %1208 = vset.pattern.permute.xlu0 0
    %1209 = vperm.xlu0 %1208, %v1070
    %v1210 = vpop.permute.xlu0 %1209
    %1213 = vset.pattern.permute.xlu0 0
    %1214 = vperm.xlu0 %1213, %v1080
    %v1215 = vpop.permute.xlu0 %1214
    %1218 = vset.pattern.permute.xlu0 0
    %1219 = vperm.xlu0 %1218, %v1090
    %v1220 = vpop.permute.xlu0 %1219
    %1223 = vset.pattern.permute.xlu0 0
    %1224 = vperm.xlu0 %1223, %v1100
    %v1225 = vpop.permute.xlu0 %1224
    %1228 = vset.pattern.permute.xlu0 0
    %1229 = vperm.xlu0 %1228, %v1110
    %v1230 = vpop.permute.xlu0 %1229
    %1233 = vset.pattern.permute.xlu0 0
    %1234 = vperm.xlu0 %1233, %v1120
    %v1235 = vpop.permute.xlu0 %1234
    %1238 = vset.pattern.permute.xlu0 0
    %1239 = vperm.xlu0 %1238, %v1130
    %v1240 = vpop.permute.xlu0 %1239
    %1243 = vset.pattern.permute.xlu0 0
    %1244 = vperm.xlu0 %1243, %v1140
    %v1245 = vpop.permute.xlu0 %1244
    %1248 = vset.pattern.permute.xlu0 0
    %1249 = vperm.xlu0 %1248, %v1150
    %v1250 = vpop.permute.xlu0 %1249
    %1253 = vset.pattern.permute.xlu0 0
    %1254 = vperm.xlu0 %1253, %v1160
    %v1255 = vpop.permute.xlu0 %1254
    %v1257 = vmul.f32 %v1161, %v1180
    %v1258 = vmul.f32 %v1162, %v1185
    %v1259 = vmul.f32 %v1163, %v1190
    %v1260 = vmul.f32 %v1164, %v1195
    %v1261 = vmul.f32 %v1165, %v1200
    %v1262 = vmul.f32 %v1166, %v1205
    %v1263 = vmul.f32 %v1167, %v1210
    %v1264 = vmul.f32 %v1168, %v1215
    %v1265 = vmul.f32 %v1169, %v1220
    %v1266 = vmul.f32 %v1170, %v1225
    %v1267 = vmul.f32 %v1171, %v1230
    %v1268 = vmul.f32 %v1172, %v1235
    %v1269 = vmul.f32 %v1173, %v1240
    %v1270 = vmul.f32 %v1174, %v1245
    %v1271 = vmul.f32 %v1175, %v1250
    %v1272 = vmul.f32 %v1176, %v1255
    %v1273 = vld [vmem:[%s2] sm:$0xf]
    %v1274 = vld [vmem:[%s2 + $0x4] sm:$0xf]
    %v1275 = vld [vmem:[%s2 + $0x8] sm:$0xf]
    %v1276 = vld [vmem:[%s2 + $0xc] sm:$0xf]
    %v1277 = vld [vmem:[%s2 + $0x10] sm:$0xf]
    %v1278 = vld [vmem:[%s2 + $0x14] sm:$0xf]
    %v1279 = vld [vmem:[%s2 + $0x18] sm:$0xf]
    %v1280 = vld [vmem:[%s2 + $0x1c] sm:$0xf]
    %v1281 = vld [vmem:[%s2 + $0x20] sm:$0xf]
    %v1282 = vld [vmem:[%s2 + $0x24] sm:$0xf]
    %v1283 = vld [vmem:[%s2 + $0x28] sm:$0xf]
    %v1284 = vld [vmem:[%s2 + $0x2c] sm:$0xf]
    %v1285 = vld [vmem:[%s2 + $0x30] sm:$0xf]
    %v1286 = vld [vmem:[%s2 + $0x34] sm:$0xf]
    %v1287 = vld [vmem:[%s2 + $0x38] sm:$0xf]
    %v1288 = vld [vmem:[%s2 + $0x3c] sm:$0xf]
    %v1289 = vpack.c.bf16 %v1258, %v1257
    %v1290 = vpack.c.bf16 %v1260, %v1259
    %v1291 = vpack.c.bf16 %v1262, %v1261
    %v1292 = vpack.c.bf16 %v1264, %v1263
    %v1293 = vpack.c.bf16 %v1266, %v1265
    %v1294 = vpack.c.bf16 %v1268, %v1267
    %v1295 = vpack.c.bf16 %v1270, %v1269
    %v1296 = vpack.c.bf16 %v1272, %v1271
    %v1313 = vunpack.c.l.b16 %v1273
    %v1314 = vunpack.c.l.b16 %v1274
    %v1315 = vunpack.c.l.b16 %v1275
    %v1316 = vunpack.c.l.b16 %v1276
    %v1317 = vunpack.c.l.b16 %v1277
    %v1318 = vunpack.c.l.b16 %v1278
    %v1319 = vunpack.c.l.b16 %v1279
    %v1320 = vunpack.c.l.b16 %v1280
    %v1321 = vunpack.c.l.b16 %v1281
    %v1322 = vunpack.c.l.b16 %v1282
    %v1323 = vunpack.c.l.b16 %v1283
    %v1324 = vunpack.c.l.b16 %v1284
    %v1325 = vunpack.c.l.b16 %v1285
    %v1326 = vunpack.c.l.b16 %v1286
    %v1327 = vunpack.c.l.b16 %v1287
    %v1328 = vunpack.c.l.b16 %v1288
    %v1329 = vpack.c.b16 %v1314, %v1313
    %v1330 = vpack.c.b16 %v1316, %v1315
    %v1331 = vpack.c.b16 %v1318, %v1317
    %v1332 = vpack.c.b16 %v1320, %v1319
    %v1333 = vpack.c.b16 %v1322, %v1321
    %v1334 = vpack.c.b16 %v1324, %v1323
    %v1335 = vpack.c.b16 %v1326, %v1325
    %v1336 = vpack.c.b16 %v1328, %v1327
    %1345 = vmatpush.bf16.msra.mxu0 %v1296
    %1346 = vmatpush.bf16.msra.mxu0 %v1295
    %1347 = vmatpush.bf16.msra.mxu0 %v1294
    %1348 = vmatpush.bf16.msra.mxu0 %v1293
    %1349 = vmatpush.bf16.msra.mxu0 %v1292
    %1350 = vmatpush.bf16.msra.mxu0 %v1291
    %1351 = vmatpush.bf16.msra.mxu0 %v1290
    %1352 = vmatpush.bf16.msra.mxu0 %v1289
    %1353 = vmatmul.bf16.gmra.mxu0 %v1329
    %v1354 = vpop.f32.mrf.mxu0
    %v1355 = vadd.f32 0.0, %v1354
    %v1356 = vpop.f32.mrf.mxu0
    %v1357 = vadd.f32 0.0, %v1356
    %1358 = vmatmul.bf16.gmra.mxu0 %v1330
    %v1359 = vpop.f32.mrf.mxu0
    %v1360 = vadd.f32 0.0, %v1359
    %v1361 = vpop.f32.mrf.mxu0
    %v1362 = vadd.f32 0.0, %v1361
    %1363 = vmatmul.bf16.gmra.mxu0 %v1331
    %v1364 = vpop.f32.mrf.mxu0
    %v1365 = vadd.f32 0.0, %v1364
    %v1366 = vpop.f32.mrf.mxu0
    %v1367 = vadd.f32 0.0, %v1366
    %1368 = vmatmul.bf16.gmra.mxu0 %v1332
    %v1369 = vpop.f32.mrf.mxu0
    %v1370 = vadd.f32 0.0, %v1369
    %v1371 = vpop.f32.mrf.mxu0
    %v1372 = vadd.f32 0.0, %v1371
    %1373 = vmatmul.bf16.gmra.mxu0 %v1333
    %v1374 = vpop.f32.mrf.mxu0
    %v1375 = vadd.f32 0.0, %v1374
    %v1376 = vpop.f32.mrf.mxu0
    %v1377 = vadd.f32 0.0, %v1376
    %1378 = vmatmul.bf16.gmra.mxu0 %v1334
    %v1379 = vpop.f32.mrf.mxu0
    %v1380 = vadd.f32 0.0, %v1379
    %v1381 = vpop.f32.mrf.mxu0
    %v1382 = vadd.f32 0.0, %v1381
    %1383 = vmatmul.bf16.gmra.mxu0 %v1335
    %v1384 = vpop.f32.mrf.mxu0
    %v1385 = vadd.f32 0.0, %v1384
    %v1386 = vpop.f32.mrf.mxu0
    %v1387 = vadd.f32 0.0, %v1386
    %1388 = vmatmul.bf16.gmra.mxu0 %v1336
    %v1389 = vpop.f32.mrf.mxu0
    %v1390 = vadd.f32 0.0, %v1389
    %v1391 = vpop.f32.mrf.mxu0
    %v1392 = vadd.f32 0.0, %v1391
    %1393 = vdwg.mxu0
    %v1394 = vmul.f32 %v967, %v1355
    %v1395 = vmul.f32 %v967, %v1357
    %v1396 = vmul.f32 %v967, %v1360
    %v1397 = vmul.f32 %v967, %v1362
    %v1398 = vmul.f32 %v967, %v1365
    %v1399 = vmul.f32 %v967, %v1367
    %v1400 = vmul.f32 %v967, %v1370
    %v1401 = vmul.f32 %v967, %v1372
    %v1402 = vmul.f32 %v967, %v1375
    %v1403 = vmul.f32 %v967, %v1377
    %v1404 = vmul.f32 %v967, %v1380
    %v1405 = vmul.f32 %v967, %v1382
    %v1406 = vmul.f32 %v967, %v1385
    %v1407 = vmul.f32 %v967, %v1387
    %v1408 = vmul.f32 %v967, %v1390
    %v1409 = vmul.f32 %v967, %v1392
    %v1410 = vmul.f32 %v984, %v1257
    %v1411 = vmul.f32 %v984, %v1258
    %v1412 = vmul.f32 %v984, %v1259
    %v1413 = vmul.f32 %v984, %v1260
    %v1414 = vmul.f32 %v984, %v1261
    %v1415 = vmul.f32 %v984, %v1262
    %v1416 = vmul.f32 %v984, %v1263
    %v1417 = vmul.f32 %v984, %v1264
    %v1418 = vmul.f32 %v984, %v1265
    %v1419 = vmul.f32 %v984, %v1266
    %v1420 = vmul.f32 %v984, %v1267
    %v1421 = vmul.f32 %v984, %v1268
    %v1422 = vmul.f32 %v984, %v1269
    %v1423 = vmul.f32 %v984, %v1270
    %v1424 = vmul.f32 %v984, %v1271
    %v1425 = vmul.f32 %v984, %v1272
    %v1426 = vadd.f32 %v1394, %v1410
    %v1427 = vadd.f32 %v1395, %v1411
    %v1428 = vadd.f32 %v1396, %v1412
    %v1429 = vadd.f32 %v1397, %v1413
    %v1430 = vadd.f32 %v1398, %v1414
    %v1431 = vadd.f32 %v1399, %v1415
    %v1432 = vadd.f32 %v1400, %v1416
    %v1433 = vadd.f32 %v1401, %v1417
    %v1434 = vadd.f32 %v1402, %v1418
    %v1435 = vadd.f32 %v1403, %v1419
    %v1436 = vadd.f32 %v1404, %v1420
    %v1437 = vadd.f32 %v1405, %v1421
    %v1438 = vadd.f32 %v1406, %v1422
    %v1439 = vadd.f32 %v1407, %v1423
    %v1440 = vadd.f32 %v1408, %v1424
    %v1441 = vadd.f32 %v1409, %v1425
    %v1442 = vmul.f32 %v1426, %v1180
    %v1443 = vmul.f32 %v1427, %v1185
    %v1444 = vmul.f32 %v1428, %v1190
    %v1445 = vmul.f32 %v1429, %v1195
    %v1446 = vmul.f32 %v1430, %v1200
    %v1447 = vmul.f32 %v1431, %v1205
    %v1448 = vmul.f32 %v1432, %v1210
    %v1449 = vmul.f32 %v1433, %v1215
    %v1450 = vmul.f32 %v1434, %v1220
    %v1451 = vmul.f32 %v1435, %v1225
    %v1452 = vmul.f32 %v1436, %v1230
    %v1453 = vmul.f32 %v1437, %v1235
    %v1454 = vmul.f32 %v1438, %v1240
    %v1455 = vmul.f32 %v1439, %v1245
    %v1456 = vmul.f32 %v1440, %v1250
    %v1457 = vmul.f32 %v1441, %v1255
    %1458 = vst [vmem:[#allocation2] sm:$0xff] %v1442
    %1459 = vst [vmem:[#allocation2 + $0x8] sm:$0xff] %v1443
    %1460 = vst [vmem:[#allocation2 + $0x10] sm:$0xff] %v1444
    %1461 = vst [vmem:[#allocation2 + $0x18] sm:$0xff] %v1445
    %1462 = vst [vmem:[#allocation2 + $0x20] sm:$0xff] %v1446
    %1463 = vst [vmem:[#allocation2 + $0x28] sm:$0xff] %v1447
    %1464 = vst [vmem:[#allocation2 + $0x30] sm:$0xff] %v1448
    %1465 = vst [vmem:[#allocation2 + $0x38] sm:$0xff] %v1449
    %1466 = vst [vmem:[#allocation2 + $0x40] sm:$0xff] %v1450
    %1467 = vst [vmem:[#allocation2 + $0x48] sm:$0xff] %v1451
    %1468 = vst [vmem:[#allocation2 + $0x50] sm:$0xff] %v1452
    %1469 = vst [vmem:[#allocation2 + $0x58] sm:$0xff] %v1453
    %1470 = vst [vmem:[#allocation2 + $0x60] sm:$0xff] %v1454
    %1471 = vst [vmem:[#allocation2 + $0x68] sm:$0xff] %v1455
    %1472 = vst [vmem:[#allocation2 + $0x70] sm:$0xff] %v1456
    %1473 = vst [vmem:[#allocation2 + $0x78] sm:$0xff] %v1457
    %v1474 = vld [vmem:[%s8] sm:$0xff]
    %v1475 = vld [vmem:[%s8 + $0x8] sm:$0xff]
    %v1476 = vld [vmem:[%s8 + $0x10] sm:$0xff]
    %v1477 = vld [vmem:[%s8 + $0x18] sm:$0xff]
    %v1478 = vld [vmem:[%s8 + $0x20] sm:$0xff]
    %v1479 = vld [vmem:[%s8 + $0x28] sm:$0xff]
    %v1480 = vld [vmem:[%s8 + $0x30] sm:$0xff]
    %v1481 = vld [vmem:[%s8 + $0x38] sm:$0xff]
    %v1482 = vld [vmem:[%s8 + $0x40] sm:$0xff]
    %v1483 = vld [vmem:[%s8 + $0x48] sm:$0xff]
    %v1484 = vld [vmem:[%s8 + $0x50] sm:$0xff]
    %v1485 = vld [vmem:[%s8 + $0x58] sm:$0xff]
    %v1486 = vld [vmem:[%s8 + $0x60] sm:$0xff]
    %v1487 = vld [vmem:[%s8 + $0x68] sm:$0xff]
    %v1488 = vld [vmem:[%s8 + $0x70] sm:$0xff]
    %v1489 = vld [vmem:[%s8 + $0x78] sm:$0xff]
    %v1490 = vpack.c.bf16 %v1443, %v1442
    %v1491 = vpack.c.bf16 %v1445, %v1444
    %v1492 = vpack.c.bf16 %v1447, %v1446
    %v1493 = vpack.c.bf16 %v1449, %v1448
    %v1494 = vpack.c.bf16 %v1451, %v1450
    %v1495 = vpack.c.bf16 %v1453, %v1452
    %v1496 = vpack.c.bf16 %v1455, %v1454
    %v1497 = vpack.c.bf16 %v1457, %v1456
    %v1498 = vld [vmem:[%s6 + $0x40] sm:$0xf]
    %v1499 = vld [vmem:[%s6 + $0x44] sm:$0xf]
    %v1500 = vld [vmem:[%s6 + $0x48] sm:$0xf]
    %v1501 = vld [vmem:[%s6 + $0x4c] sm:$0xf]
    %v1502 = vld [vmem:[%s6 + $0x50] sm:$0xf]
    %v1503 = vld [vmem:[%s6 + $0x54] sm:$0xf]
    %v1504 = vld [vmem:[%s6 + $0x58] sm:$0xf]
    %v1505 = vld [vmem:[%s6 + $0x5c] sm:$0xf]
    %v1506 = vld [vmem:[%s6 + $0x60] sm:$0xf]
    %v1507 = vld [vmem:[%s6 + $0x64] sm:$0xf]
    %v1508 = vld [vmem:[%s6 + $0x68] sm:$0xf]
    %v1509 = vld [vmem:[%s6 + $0x6c] sm:$0xf]
    %v1510 = vld [vmem:[%s6 + $0x70] sm:$0xf]
    %v1511 = vld [vmem:[%s6 + $0x74] sm:$0xf]
    %v1512 = vld [vmem:[%s6 + $0x78] sm:$0xf]
    %v1513 = vld [vmem:[%s6 + $0x7c] sm:$0xf]
    %v1530 = vunpack.c.l.b16 %v1498
    %v1531 = vunpack.c.l.b16 %v1499
    %v1532 = vunpack.c.l.b16 %v1500
    %v1533 = vunpack.c.l.b16 %v1501
    %v1534 = vunpack.c.l.b16 %v1502
    %v1535 = vunpack.c.l.b16 %v1503
    %v1536 = vunpack.c.l.b16 %v1504
    %v1537 = vunpack.c.l.b16 %v1505
    %v1538 = vunpack.c.l.b16 %v1506
    %v1539 = vunpack.c.l.b16 %v1507
    %v1540 = vunpack.c.l.b16 %v1508
    %v1541 = vunpack.c.l.b16 %v1509
    %v1542 = vunpack.c.l.b16 %v1510
    %v1543 = vunpack.c.l.b16 %v1511
    %v1544 = vunpack.c.l.b16 %v1512
    %v1545 = vunpack.c.l.b16 %v1513
    %v1546 = vpack.c.b16 %v1531, %v1530
    %v1547 = vpack.c.b16 %v1533, %v1532
    %v1548 = vpack.c.b16 %v1535, %v1534
    %v1549 = vpack.c.b16 %v1537, %v1536
    %v1550 = vpack.c.b16 %v1539, %v1538
    %v1551 = vpack.c.b16 %v1541, %v1540
    %v1552 = vpack.c.b16 %v1543, %v1542
    %v1553 = vpack.c.b16 %v1545, %v1544
    %1562 = vmatpush.bf16.msra.mxu0 %v1553
    %1563 = vmatpush.bf16.msra.mxu0 %v1552
    %1564 = vmatpush.bf16.msra.mxu0 %v1551
    %1565 = vmatpush.bf16.msra.mxu0 %v1550
    %1566 = vmatpush.bf16.msra.mxu0 %v1549
    %1567 = vmatpush.bf16.msra.mxu0 %v1548
    %1568 = vmatpush.bf16.msra.mxu0 %v1547
    %1569 = vmatpush.bf16.msra.mxu0 %v1546
    %1570 = vmatmul.bf16.gmra.mxu0 %v1490
    %v1571 = vpop.f32.mrf.mxu0
    %v1572 = vadd.f32 0.0, %v1571
    %v1573 = vpop.f32.mrf.mxu0
    %v1574 = vadd.f32 0.0, %v1573
    %1575 = vmatmul.bf16.gmra.mxu0 %v1491
    %v1576 = vpop.f32.mrf.mxu0
    %v1577 = vadd.f32 0.0, %v1576
    %v1578 = vpop.f32.mrf.mxu0
    %v1579 = vadd.f32 0.0, %v1578
    %1580 = vmatmul.bf16.gmra.mxu0 %v1492
    %v1581 = vpop.f32.mrf.mxu0
    %v1582 = vadd.f32 0.0, %v1581
    %v1583 = vpop.f32.mrf.mxu0
    %v1584 = vadd.f32 0.0, %v1583
    %1585 = vmatmul.bf16.gmra.mxu0 %v1493
    %v1586 = vpop.f32.mrf.mxu0
    %v1587 = vadd.f32 0.0, %v1586
    %v1588 = vpop.f32.mrf.mxu0
    %v1589 = vadd.f32 0.0, %v1588
    %1590 = vmatmul.bf16.gmra.mxu0 %v1494
    %v1591 = vpop.f32.mrf.mxu0
    %v1592 = vadd.f32 0.0, %v1591
    %v1593 = vpop.f32.mrf.mxu0
    %v1594 = vadd.f32 0.0, %v1593
    %1595 = vmatmul.bf16.gmra.mxu0 %v1495
    %v1596 = vpop.f32.mrf.mxu0
    %v1597 = vadd.f32 0.0, %v1596
    %v1598 = vpop.f32.mrf.mxu0
    %v1599 = vadd.f32 0.0, %v1598
    %1600 = vmatmul.bf16.gmra.mxu0 %v1496
    %v1601 = vpop.f32.mrf.mxu0
    %v1602 = vadd.f32 0.0, %v1601
    %v1603 = vpop.f32.mrf.mxu0
    %v1604 = vadd.f32 0.0, %v1603
    %1605 = vmatmul.bf16.gmra.mxu0 %v1497
    %v1606 = vpop.f32.mrf.mxu0
    %v1607 = vadd.f32 0.0, %v1606
    %v1608 = vpop.f32.mrf.mxu0
    %v1609 = vadd.f32 0.0, %v1608
    %1610 = vdwg.mxu0
    %v1611 = vadd.f32 %v1474, %v1572
    %v1612 = vadd.f32 %v1475, %v1574
    %v1613 = vadd.f32 %v1476, %v1577
    %v1614 = vadd.f32 %v1477, %v1579
    %v1615 = vadd.f32 %v1478, %v1582
    %v1616 = vadd.f32 %v1479, %v1584
    %v1617 = vadd.f32 %v1480, %v1587
    %v1618 = vadd.f32 %v1481, %v1589
    %v1619 = vadd.f32 %v1482, %v1592
    %v1620 = vadd.f32 %v1483, %v1594
    %v1621 = vadd.f32 %v1484, %v1597
    %v1622 = vadd.f32 %v1485, %v1599
    %v1623 = vadd.f32 %v1486, %v1602
    %v1624 = vadd.f32 %v1487, %v1604
    %v1625 = vadd.f32 %v1488, %v1607
    %v1626 = vadd.f32 %v1489, %v1609
    %1627 = vst [vmem:[%s8] sm:$0xff] %v1611
    %1628 = vst [vmem:[%s8 + $0x8] sm:$0xff] %v1612
    %1629 = vst [vmem:[%s8 + $0x10] sm:$0xff] %v1613
    %1630 = vst [vmem:[%s8 + $0x18] sm:$0xff] %v1614
    %1631 = vst [vmem:[%s8 + $0x20] sm:$0xff] %v1615
    %1632 = vst [vmem:[%s8 + $0x28] sm:$0xff] %v1616
    %1633 = vst [vmem:[%s8 + $0x30] sm:$0xff] %v1617
    %1634 = vst [vmem:[%s8 + $0x38] sm:$0xff] %v1618
    %1635 = vst [vmem:[%s8 + $0x40] sm:$0xff] %v1619
    %1636 = vst [vmem:[%s8 + $0x48] sm:$0xff] %v1620
    %1637 = vst [vmem:[%s8 + $0x50] sm:$0xff] %v1621
    %1638 = vst [vmem:[%s8 + $0x58] sm:$0xff] %v1622
    %1639 = vst [vmem:[%s8 + $0x60] sm:$0xff] %v1623
    %1640 = vst [vmem:[%s8 + $0x68] sm:$0xff] %v1624
    %1641 = vst [vmem:[%s8 + $0x70] sm:$0xff] %v1625
    %1642 = vst [vmem:[%s8 + $0x78] sm:$0xff] %v1626
    %v1643 = vld [vmem:[%s8] sm:$0xff]
    %v1644 = vld [vmem:[%s8 + $0x8] sm:$0xff]
    %v1645 = vld [vmem:[%s8 + $0x10] sm:$0xff]
    %v1646 = vld [vmem:[%s8 + $0x18] sm:$0xff]
    %v1647 = vld [vmem:[%s8 + $0x20] sm:$0xff]
    %v1648 = vld [vmem:[%s8 + $0x28] sm:$0xff]
    %v1649 = vld [vmem:[%s8 + $0x30] sm:$0xff]
    %v1650 = vld [vmem:[%s8 + $0x38] sm:$0xff]
    %v1651 = vld [vmem:[%s8 + $0x40] sm:$0xff]
    %v1652 = vld [vmem:[%s8 + $0x48] sm:$0xff]
    %v1653 = vld [vmem:[%s8 + $0x50] sm:$0xff]
    %v1654 = vld [vmem:[%s8 + $0x58] sm:$0xff]
    %v1655 = vld [vmem:[%s8 + $0x60] sm:$0xff]
    %v1656 = vld [vmem:[%s8 + $0x68] sm:$0xff]
    %v1657 = vld [vmem:[%s8 + $0x70] sm:$0xff]
    %v1658 = vld [vmem:[%s8 + $0x78] sm:$0xff]
    %v1659 = vld [vmem:[%s7] sm:$0x1]
    %v1661 = vperm.slane %v1659, 0
    %v1663 = vadd.f32 %v1643, %v1661
    %v1664 = vadd.f32 %v1644, %v1661
    %v1665 = vadd.f32 %v1645, %v1661
    %v1666 = vadd.f32 %v1646, %v1661
    %v1667 = vadd.f32 %v1647, %v1661
    %v1668 = vadd.f32 %v1648, %v1661
    %v1669 = vadd.f32 %v1649, %v1661
    %v1670 = vadd.f32 %v1650, %v1661
    %v1671 = vadd.f32 %v1651, %v1661
    %v1672 = vadd.f32 %v1652, %v1661
    %v1673 = vadd.f32 %v1653, %v1661
    %v1674 = vadd.f32 %v1654, %v1661
    %v1675 = vadd.f32 %v1655, %v1661
    %v1676 = vadd.f32 %v1656, %v1661
    %v1677 = vadd.f32 %v1657, %v1661
    %v1678 = vadd.f32 %v1658, %v1661
    %v1679 = vlaneseq
    %v1680 = vand.u32 %v1679, 127
    %vm1681 = vcmp.lt.s32.totalorder %v1680, 8
    %v1682 = vsel %vm1681, %v1663, -1e+30
    %v1683 = vsel %vm1681, %v1664, -1e+30
    %v1684 = vsel %vm1681, %v1665, -1e+30
    %v1685 = vsel %vm1681, %v1666, -1e+30
    %v1686 = vsel %vm1681, %v1667, -1e+30
    %v1687 = vsel %vm1681, %v1668, -1e+30
    %v1688 = vsel %vm1681, %v1669, -1e+30
    %v1689 = vsel %vm1681, %v1670, -1e+30
    %v1690 = vsel %vm1681, %v1671, -1e+30
    %v1691 = vsel %vm1681, %v1672, -1e+30
    %v1692 = vsel %vm1681, %v1673, -1e+30
    %v1693 = vsel %vm1681, %v1674, -1e+30
    %v1694 = vsel %vm1681, %v1675, -1e+30
    %v1695 = vsel %vm1681, %v1676, -1e+30
    %v1696 = vsel %vm1681, %v1677, -1e+30
    %v1697 = vsel %vm1681, %v1678, -1e+30
    %1698 = vmax.xlane.f32.xlu0 %v1682
    %v1699 = vpop.xlane.xlu0 %1698
    %1700 = vmax.xlane.f32.xlu0 %v1683
    %v1701 = vpop.xlane.xlu0 %1700
    %1702 = vmax.xlane.f32.xlu0 %v1684
    %v1703 = vpop.xlane.xlu0 %1702
    %1704 = vmax.xlane.f32.xlu0 %v1685
    %v1705 = vpop.xlane.xlu0 %1704
    %1706 = vmax.xlane.f32.xlu0 %v1686
    %v1707 = vpop.xlane.xlu0 %1706
    %1708 = vmax.xlane.f32.xlu0 %v1687
    %v1709 = vpop.xlane.xlu0 %1708
    %1710 = vmax.xlane.f32.xlu0 %v1688
    %v1711 = vpop.xlane.xlu0 %1710
    %1712 = vmax.xlane.f32.xlu0 %v1689
    %v1713 = vpop.xlane.xlu0 %1712
    %1714 = vmax.xlane.f32.xlu0 %v1690
    %v1715 = vpop.xlane.xlu0 %1714
    %1716 = vmax.xlane.f32.xlu0 %v1691
    %v1717 = vpop.xlane.xlu0 %1716
    %1718 = vmax.xlane.f32.xlu0 %v1692
    %v1719 = vpop.xlane.xlu0 %1718
    %1720 = vmax.xlane.f32.xlu0 %v1693
    %v1721 = vpop.xlane.xlu0 %1720
    %1722 = vmax.xlane.f32.xlu0 %v1694
    %v1723 = vpop.xlane.xlu0 %1722
    %1724 = vmax.xlane.f32.xlu0 %v1695
    %v1725 = vpop.xlane.xlu0 %1724
    %1726 = vmax.xlane.f32.xlu0 %v1696
    %v1727 = vpop.xlane.xlu0 %1726
    %1728 = vmax.xlane.f32.xlu0 %v1697
    %v1729 = vpop.xlane.xlu0 %1728
    %v1730 = vsub.f32 %v1682, %v1699
    %v1731 = vsub.f32 %v1683, %v1701
    %v1732 = vsub.f32 %v1684, %v1703
    %v1733 = vsub.f32 %v1685, %v1705
    %v1734 = vsub.f32 %v1686, %v1707
    %v1735 = vsub.f32 %v1687, %v1709
    %v1736 = vsub.f32 %v1688, %v1711
    %v1737 = vsub.f32 %v1689, %v1713
    %v1738 = vsub.f32 %v1690, %v1715
    %v1739 = vsub.f32 %v1691, %v1717
    %v1740 = vsub.f32 %v1692, %v1719
    %v1741 = vsub.f32 %v1693, %v1721
    %v1742 = vsub.f32 %v1694, %v1723
    %v1743 = vsub.f32 %v1695, %v1725
    %v1744 = vsub.f32 %v1696, %v1727
    %v1745 = vsub.f32 %v1697, %v1729
    %v1746 = vmul.f32 %v1730, 1.442695
    %v1747 = vpow.pop %v1746
    %v1748 = vmul.f32 %v1731, 1.442695
    %v1749 = vpow.pop %v1748
    %v1750 = vmul.f32 %v1732, 1.442695
    %v1751 = vpow.pop %v1750
    %v1752 = vmul.f32 %v1733, 1.442695
    %v1753 = vpow.pop %v1752
    %v1754 = vmul.f32 %v1734, 1.442695
    %v1755 = vpow.pop %v1754
    %v1756 = vmul.f32 %v1735, 1.442695
    %v1757 = vpow.pop %v1756
    %v1758 = vmul.f32 %v1736, 1.442695
    %v1759 = vpow.pop %v1758
    %v1760 = vmul.f32 %v1737, 1.442695
    %v1761 = vpow.pop %v1760
    %v1762 = vmul.f32 %v1738, 1.442695
    %v1763 = vpow.pop %v1762
    %v1764 = vmul.f32 %v1739, 1.442695
    %v1765 = vpow.pop %v1764
    %v1766 = vmul.f32 %v1740, 1.442695
    %v1767 = vpow.pop %v1766
    %v1768 = vmul.f32 %v1741, 1.442695
    %v1769 = vpow.pop %v1768
    %v1770 = vmul.f32 %v1742, 1.442695
    %v1771 = vpow.pop %v1770
    %v1772 = vmul.f32 %v1743, 1.442695
    %v1773 = vpow.pop %v1772
    %v1774 = vmul.f32 %v1744, 1.442695
    %v1775 = vpow.pop %v1774
    %v1776 = vmul.f32 %v1745, 1.442695
    %v1777 = vpow.pop %v1776
    %1778 = vadd.xlane.f32.xlu0 %v1747
    %v1779 = vpop.xlane.xlu0 %1778
    %1780 = vadd.xlane.f32.xlu0 %v1749
    %v1781 = vpop.xlane.xlu0 %1780
    %1782 = vadd.xlane.f32.xlu0 %v1751
    %v1783 = vpop.xlane.xlu0 %1782
    %1784 = vadd.xlane.f32.xlu0 %v1753
    %v1785 = vpop.xlane.xlu0 %1784
    %1786 = vadd.xlane.f32.xlu0 %v1755
    %v1787 = vpop.xlane.xlu0 %1786
    %1788 = vadd.xlane.f32.xlu0 %v1757
    %v1789 = vpop.xlane.xlu0 %1788
    %1790 = vadd.xlane.f32.xlu0 %v1759
    %v1791 = vpop.xlane.xlu0 %1790
    %1792 = vadd.xlane.f32.xlu0 %v1761
    %v1793 = vpop.xlane.xlu0 %1792
    %1794 = vadd.xlane.f32.xlu0 %v1763
    %v1795 = vpop.xlane.xlu0 %1794
    %1796 = vadd.xlane.f32.xlu0 %v1765
    %v1797 = vpop.xlane.xlu0 %1796
    %1798 = vadd.xlane.f32.xlu0 %v1767
    %v1799 = vpop.xlane.xlu0 %1798
    %1800 = vadd.xlane.f32.xlu0 %v1769
    %v1801 = vpop.xlane.xlu0 %1800
    %1802 = vadd.xlane.f32.xlu0 %v1771
    %v1803 = vpop.xlane.xlu0 %1802
    %1804 = vadd.xlane.f32.xlu0 %v1773
    %v1805 = vpop.xlane.xlu0 %1804
    %1806 = vadd.xlane.f32.xlu0 %v1775
    %v1807 = vpop.xlane.xlu0 %1806
    %1808 = vadd.xlane.f32.xlu0 %v1777
    %v1809 = vpop.xlane.xlu0 %1808
    %v1810 = vlog2.pop %v1779
    %v1811 = vmul.f32 %v1810, 0.6931472
    %v1812 = vlog2.pop %v1781
    %v1813 = vmul.f32 %v1812, 0.6931472
    %v1814 = vlog2.pop %v1783
    %v1815 = vmul.f32 %v1814, 0.6931472
    %v1816 = vlog2.pop %v1785
    %v1817 = vmul.f32 %v1816, 0.6931472
    %v1818 = vlog2.pop %v1787
    %v1819 = vmul.f32 %v1818, 0.6931472
    %v1820 = vlog2.pop %v1789
    %v1821 = vmul.f32 %v1820, 0.6931472
    %v1822 = vlog2.pop %v1791
    %v1823 = vmul.f32 %v1822, 0.6931472
    %v1824 = vlog2.pop %v1793
    %v1825 = vmul.f32 %v1824, 0.6931472
    %v1826 = vlog2.pop %v1795
    %v1827 = vmul.f32 %v1826, 0.6931472
    %v1828 = vlog2.pop %v1797
    %v1829 = vmul.f32 %v1828, 0.6931472
    %v1830 = vlog2.pop %v1799
    %v1831 = vmul.f32 %v1830, 0.6931472
    %v1832 = vlog2.pop %v1801
    %v1833 = vmul.f32 %v1832, 0.6931472
    %v1834 = vlog2.pop %v1803
    %v1835 = vmul.f32 %v1834, 0.6931472
    %v1836 = vlog2.pop %v1805
    %v1837 = vmul.f32 %v1836, 0.6931472
    %v1838 = vlog2.pop %v1807
    %v1839 = vmul.f32 %v1838, 0.6931472
    %v1840 = vlog2.pop %v1809
    %v1841 = vmul.f32 %v1840, 0.6931472
    %v1842 = vsub.f32 %v1730, %v1811
    %v1843 = vsub.f32 %v1731, %v1813
    %v1844 = vsub.f32 %v1732, %v1815
    %v1845 = vsub.f32 %v1733, %v1817
    %v1846 = vsub.f32 %v1734, %v1819
    %v1847 = vsub.f32 %v1735, %v1821
    %v1848 = vsub.f32 %v1736, %v1823
    %v1849 = vsub.f32 %v1737, %v1825
    %v1850 = vsub.f32 %v1738, %v1827
    %v1851 = vsub.f32 %v1739, %v1829
    %v1852 = vsub.f32 %v1740, %v1831
    %v1853 = vsub.f32 %v1741, %v1833
    %v1854 = vsub.f32 %v1742, %v1835
    %v1855 = vsub.f32 %v1743, %v1837
    %v1856 = vsub.f32 %v1744, %v1839
    %v1857 = vsub.f32 %v1745, %v1841
    %1858 = vst [vmem:[%s8] sm:$0xff] %v1842
    %1859 = vst [vmem:[%s8 + $0x8] sm:$0xff] %v1843
    %1860 = vst [vmem:[%s8 + $0x10] sm:$0xff] %v1844
    %1861 = vst [vmem:[%s8 + $0x18] sm:$0xff] %v1845
    %1862 = vst [vmem:[%s8 + $0x20] sm:$0xff] %v1846
    %1863 = vst [vmem:[%s8 + $0x28] sm:$0xff] %v1847
    %1864 = vst [vmem:[%s8 + $0x30] sm:$0xff] %v1848
    %1865 = vst [vmem:[%s8 + $0x38] sm:$0xff] %v1849
    %1866 = vst [vmem:[%s8 + $0x40] sm:$0xff] %v1850
    %1867 = vst [vmem:[%s8 + $0x48] sm:$0xff] %v1851
    %1868 = vst [vmem:[%s8 + $0x50] sm:$0xff] %v1852
    %1869 = vst [vmem:[%s8 + $0x58] sm:$0xff] %v1853
    %1870 = vst [vmem:[%s8 + $0x60] sm:$0xff] %v1854
    %1871 = vst [vmem:[%s8 + $0x68] sm:$0xff] %v1855
    %1872 = vst [vmem:[%s8 + $0x70] sm:$0xff] %v1856
    %1873 = vst [vmem:[%s8 + $0x78] sm:$0xff] %v1857
    // Predicated region
    $region38: #{_akgnn_forward_impl.1} parent=1 // pred_check
      _
    $region39: #{_akgnn_forward_impl.1} parent=1 // pred_check_branch
      %1875 = sbr.rel (0) target = $region41
    $region40: #{_akgnn_forward_impl.1} parent=1 // pred_region
      _
    $region41: #{_akgnn_forward_impl.1} parent=1 // pred_fallthru
      _
    // Predicated region
    $region42: #{_akgnn_forward_impl.1} parent=1 // pred_check
      _
    $region43: #{_akgnn_forward_impl.1} parent=1 // pred_check_branch
      %1877 = sbr.rel (0) target = $region45
    $region44: #{_akgnn_forward_impl.1} parent=1 // pred_region
      _
    $region45: #{_akgnn_forward_impl.1} parent=1 // pred_fallthru
      _
    %1878 = vsyncpa [#allocation4], 1

</llo_original>
